<compile_context>
chip_gen: v6e
topology: v6e:2x2x1
jax: 0.10.0
libtpu: 0.0.40
codegen_flags: <defaults>
</compile_context>

<pallas_src>
import jax
import jax.numpy as jnp
from jax.experimental import pallas as pl
from jax.experimental.pallas import tpu as pltpu

# ---- small, module-consistent dimensions --------------------------------
B = 2              # batch
C = 64             # cov_channel       (2048 in the original)
H = W = 7          # backbone output spatial (7x7 at 224 input)
HW = H * W
PARTS = 10         # self.parts (hard-coded in the module)
NUM_CLASSES = 8    # num_classes
IN_CHANNEL = 16    # word-embedding dim (300 in the original)
GC_HIDDEN = 32     # gc1 output dim     (1024 in the original)
MAP_THRESHOLD = 0.5
LEAKY_SLOPE = 0.2  # nn.LeakyReLU(0.2)


# ------------------------------ fused kernel ------------------------------
def _gcn_resnet_kernel(feat_ref, covw_ref, covb_ref, fcw_ref, gcn_ref, out_ref):
    """Fused attention part max-pooling + fc + GCN classifier.

    feat_ref : (C, B*HW)          backbone features, batch*spatial lane-dense
    covw_ref : (PARTS, C)         1x1 conv weight (squeezed)
    covb_ref : (PARTS, 1)         1x1 conv bias
    fcw_ref  : (PARTS, C, C)      fc weight per part, (C_out, C_in)
    gcn_ref  : (NUM_CLASSES, C)   precomputed GCN-branch output (hoisted)
    out_ref  : (NUM_CLASSES, B)   logits, transposed (wrapper flips to (B, NC))
    """
    feat = feat_ref[...]                                          # (C, B*HW)

    # -- attention maps: ONE batched 1x1-conv matmul + ONE sigmoid pass ------
    logits = jnp.dot(covw_ref[...], feat,
                     preferred_element_type=jnp.float32) + covb_ref[...]
    wmap = jax.nn.sigmoid(logits)                                 # (PARTS, B*HW), in (0,1)

    # -- per-image threshold: keep a part iff its local max >= 0.5*image max --
    # (matches the source: threshold is RELATIVE to the per-image global max)
    lane = jax.lax.broadcasted_iota(jnp.int32, (1, B * HW), 1)
    is_b0 = lane < HW                                             # (1, B*HW) image selector
    w0 = jnp.where(is_b0, wmap, 0.0)                              # sigmoid > 0, so 0 is a safe fill
    w1 = jnp.where(is_b0, 0.0, wmap)
    lmax0 = jnp.max(w0, axis=1, keepdims=True)                    # (PARTS, 1) local max, image 0
    lmax1 = jnp.max(w1, axis=1, keepdims=True)
    gmax0 = jnp.max(lmax0)                                        # image global max, from lmax
    gmax1 = jnp.max(lmax1)
    keep0 = (lmax0 >= MAP_THRESHOLD * gmax0).astype(jnp.float32)  # (PARTS, 1)
    keep1 = (lmax1 >= MAP_THRESHOLD * gmax1).astype(jnp.float32)
    keep = jnp.where(is_b0, keep0, keep1)                         # (PARTS, B*HW)

    # last part pools the RAW feature map (weight == 1): fold the override and
    # the keep mask into a single select.
    part_is_last = (jax.lax.broadcasted_iota(jnp.int32, (PARTS, 1), 0)
                    == PARTS - 1)                                 # (PARTS, 1)
    w_eff = jnp.where(part_is_last, 1.0, keep * wmap)             # (PARTS, B*HW)

    # -- part-wise attention max-pool + fc, accumulated per part -------------
    # Running accumulation: no (PARTS, C, HW) broadcast product, no scatter
    # into a scratch block, no store->load round trip.  Live set stays well
    # under the 64-vreg file.
    acc_t = jnp.zeros((C, B), jnp.float32)                        # feat_fc, transposed
    for p in range(PARTS):                                        # unrolled, static indices
        y = feat * w_eff[p:p + 1, :]                              # (C, B*HW)
        r0 = jnp.max(jnp.where(is_b0, y, -jnp.inf),
                     axis=1, keepdims=True)                       # (C, 1) pooled, image 0
        r1 = jnp.max(jnp.where(is_b0, -jnp.inf, y),
                     axis=1, keepdims=True)                       # (C, 1) pooled, image 1
        pool_p = jnp.concatenate([r0, r1], axis=1)                # (C, B)
        acc_t = acc_t + jnp.dot(fcw_ref[p], pool_p,
                                preferred_element_type=jnp.float32)

    # -- classifier against the (hoisted, cached) GCN label embeddings -------
    out_ref[...] = jnp.dot(gcn_ref[...], acc_t,
                           preferred_element_type=jnp.float32)    # (NUM_CLASSES, B)


# ------------------------------ wrappers -----------------------------------
def gen_adj(A):
    # Standard ML-GCN normalization: adj = (A @ D)^T @ D, D = diag(rowsum(A)^-1/2)
    d = jnp.power(jnp.sum(A, axis=1), -0.5)
    D = jnp.diag(d)
    return (A @ D).T @ D


def precompute_classifier_weights(inp, params):
    """Batch-independent work, hoisted out of the kernel and the per-call path.

    Computed ONCE per model (cacheable across inference calls): the normalized
    adjacency, the label-embedding GCN branch, and layout-only reshapes of the
    fc weight.
    """
    inp0 = inp[0]                                   # module does `inp = inp[0]`
    adj = gen_adj(params["A"])
    h = adj @ (inp0 @ params["gc1_w"])              # gc1
    h = jnp.where(h > 0.0, h, LEAKY_SLOPE * h)      # nn.LeakyReLU(0.2)
    gcn = adj @ (h @ params["gc2_w"])               # gc2 -> (NUM_CLASSES, C)
    return {
        "cov_w": params["cov_w"],                                  # (PARTS, C)
        "cov_b": params["cov_b"],                                  # (PARTS, 1)
        # fc weight split per part and pre-transposed to (PARTS, C_out, C_in) so
        # the per-part contraction is a standard (C_out,C_in) @ (C_in,B) matmul.
        "fc_w3t": params["fc_w"].reshape(PARTS, C, C).transpose(0, 2, 1),
        "gcn": gcn,                                                # (NUM_CLASSES, C)
    }


@jax.jit
def gcn_resnet_forward(feature_nchw, prep):
    """feature_nchw: (B, C, H, W) output of the (external) ResNet backbone."""
    # Layout plumbing only: (B, C, H, W) -> (C, B*HW); channels on sublanes,
    # batch*spatial lane-dense (98/128 lanes used by conv/sigmoid/threshold).
    feat = jnp.transpose(feature_nchw, (1, 0, 2, 3)).reshape(C, B * HW)

    vmem = pltpu.MemorySpace.VMEM
    out_t = pl.pallas_call(
        _gcn_resnet_kernel,
        # No grid: total working set (< 256 KiB) is VMEM-resident for the single
        # invocation, so every array maps whole-array into VMEM.
        out_shape=jax.ShapeDtypeStruct((NUM_CLASSES, B), jnp.float32),
        in_specs=[pl.BlockSpec(memory_space=vmem)] * 5,
        out_specs=pl.BlockSpec(memory_space=vmem),
    )(feat, prep["cov_w"], prep["cov_b"], prep["fc_w3t"], prep["gcn"])

    # Kernel works in (C, B)/(NUM_CLASSES, B) orientation so every matmul is a
    # standard MXU op; flip the tiny (8, 2) result outside the kernel.
    return out_t.T


# --------------------------- parameter init --------------------------------
def init_params(key):
    ks = jax.random.split(key, 6)

    def u(k, shape, stdv):
        return jax.random.uniform(k, shape, jnp.float32, -stdv, stdv)

    return {
        # Conv2d(C -> parts, 1x1): weight squeezed to (PARTS, C), bias (PARTS, 1).
        # TODO(synk): real checkpoints store Conv2d weight as (out, in, 1, 1) and
        # nn.Linear as (out, in); port with the matching squeeze / transpose.
        "cov_w": u(ks[0], (PARTS, C), 1.0 / (C ** 0.5)),
        "cov_b": u(ks[1], (PARTS, 1), 1.0 / (C ** 0.5)),
        # GraphConvolution weights (uniform(-1/sqrt(out), 1/sqrt(out)), no bias)
        "gc1_w": u(ks[2], (IN_CHANNEL, GC_HIDDEN), 1.0 / (GC_HIDDEN ** 0.5)),
        "gc2_w": u(ks[3], (GC_HIDDEN, C), 1.0 / (C ** 0.5)),
        # nn.Linear(parts*C -> C, bias=False), stored as (in, out)
        "fc_w": u(ks[4], (PARTS * C, C), 1.0 / ((PARTS * C) ** 0.5)),
        # TODO(synk): gen_A needs a co-occurrence adj_file; A is initialized
        # synthetically (positive entries so D^-1/2 in gen_adj is finite).
        "A": jax.random.uniform(ks[5], (NUM_CLASSES, NUM_CLASSES),
                                jnp.float32, 0.1, 1.0) + jnp.eye(NUM_CLASSES),
    }


if __name__ == "__main__":
    key = jax.random.PRNGKey(0)
    kp, kf, ki = jax.random.split(key, 3)
    params = init_params(kp)

    feature = jax.random.normal(kf, (B, C, H, W), jnp.float32)     # backbone output
    inp = jax.random.normal(ki, (B, NUM_CLASSES, IN_CHANNEL), jnp.float32)

    # Batch-independent precompute: done once per model, reused across calls.
    prep = precompute_classifier_weights(inp, params)

    out = gcn_resnet_forward(feature, prep)
    out = jax.block_until_ready(out)
    assert out.shape == (B, NUM_CLASSES) and out.dtype == jnp.float32
    assert bool(jnp.all(jnp.isfinite(out)))
    print("KERNEL_OK")
</pallas_src>

<mosaic_0001>
module attributes {stable_mosaic.version = 11 : i64} {
  func.func @_gcn_resnet_kernel(%arg0: memref<64x98xf32, #tpu.memory_space<vmem>>, %arg1: memref<10x64xf32, #tpu.memory_space<vmem>>, %arg2: memref<10x1xf32, #tpu.memory_space<vmem>>, %arg3: memref<10x64x64xf32, #tpu.memory_space<vmem>>, %arg4: memref<8x64xf32, #tpu.memory_space<vmem>>, %arg5: memref<8x2xf32, #tpu.memory_space<vmem>>) attributes {dimension_semantics = [], scalar_prefetch = 0 : i64, scratch_operands = 0 : i64, tpu.core_type = #tpu.core_type<tc>} {
    %c0 = arith.constant 0 : index
    %c0_0 = arith.constant 0 : index
    %0 = vector.load %arg0[%c0, %c0_0] : memref<64x98xf32, #tpu.memory_space<vmem>>, vector<64x98xf32>
    %c0_1 = arith.constant 0 : index
    %c0_2 = arith.constant 0 : index
    %1 = vector.load %arg1[%c0_1, %c0_2] : memref<10x64xf32, #tpu.memory_space<vmem>>, vector<10x64xf32>
    %cst = arith.constant dense<0.000000e+00> : vector<10x98xf32>
    %2 = tpu.matmul %1, %0, %cst {dimension_numbers = #tpu.dot_dimension_numbers<[1], [0], [0], [1], [0, 0, 1, 1], [], []>} : vector<10x64xf32>, vector<64x98xf32>, vector<10x98xf32> -> vector<10x98xf32>
    %c0_3 = arith.constant 0 : index
    %c0_4 = arith.constant 0 : index
    %3 = vector.load %arg2[%c0_3, %c0_4] : memref<10x1xf32, #tpu.memory_space<vmem>>, vector<10x1xf32>
    %4 = vector.broadcast %3 : vector<10x1xf32> to vector<10x98xf32>
    %5 = arith.addf %2, %4 : vector<10x98xf32>
    %6 = arith.negf %5 : vector<10x98xf32>
    %7 = math.exp %6 : vector<10x98xf32>
    %cst_5 = arith.constant 1.000000e+00 : f32
    %8 = vector.broadcast %cst_5 : f32 to vector<10x98xf32>
    %9 = arith.addf %8, %7 : vector<10x98xf32>
    %10 = arith.divf %8, %9 : vector<10x98xf32>
    %11 = tpu.iota {dimensions = array<i32: 1>} : vector<1x98xi32>
    %c49_i32 = arith.constant 49 : i32
    %12 = vector.broadcast %c49_i32 : i32 to vector<1x98xi32>
    %13 = arith.cmpi slt, %11, %12 : vector<1x98xi32>
    %cst_6 = arith.constant 0.000000e+00 : f32
    %14 = vector.shape_cast %13 : vector<1x98xi1> to vector<1x98xi1>
    %15 = vector.broadcast %14 : vector<1x98xi1> to vector<10x98xi1>
    %16 = vector.broadcast %cst_6 : f32 to vector<10x98xf32>
    %17 = arith.select %15, %10, %16 : vector<10x98xi1>, vector<10x98xf32>
    %cst_7 = arith.constant 0.000000e+00 : f32
    %18 = vector.shape_cast %13 : vector<1x98xi1> to vector<1x98xi1>
    %19 = vector.broadcast %18 : vector<1x98xi1> to vector<10x98xi1>
    %20 = vector.broadcast %cst_7 : f32 to vector<10x98xf32>
    %21 = arith.select %19, %20, %10 : vector<10x98xi1>, vector<10x98xf32>
    %cst_8 = arith.constant dense<0xFF800000> : vector<10xf32>
    %22 = vector.multi_reduction <maximumf>, %17, %cst_8 [1] : vector<10x98xf32> to vector<10xf32>
    %23 = vector.shape_cast %22 : vector<10xf32> to vector<10x1xf32>
    %cst_9 = arith.constant dense<0xFF800000> : vector<10xf32>
    %24 = vector.multi_reduction <maximumf>, %21, %cst_9 [1] : vector<10x98xf32> to vector<10xf32>
    %25 = vector.shape_cast %24 : vector<10xf32> to vector<10x1xf32>
    %26 = vector.shape_cast %23 : vector<10x1xf32> to vector<1x10x1xf32>
    %cst_10 = arith.constant dense<0xFF800000> : vector<1xf32>
    %27 = vector.multi_reduction <maximumf>, %26, %cst_10 [1, 2] : vector<1x10x1xf32> to vector<1xf32>
    %28 = vector.shape_cast %27 : vector<1xf32> to vector<1x1x1xf32>
    %29 = vector.extract %28[0, 0, 0] : f32 from vector<1x1x1xf32>
    %30 = vector.shape_cast %25 : vector<10x1xf32> to vector<1x10x1xf32>
    %cst_11 = arith.constant dense<0xFF800000> : vector<1xf32>
    %31 = vector.multi_reduction <maximumf>, %30, %cst_11 [1, 2] : vector<1x10x1xf32> to vector<1xf32>
    %32 = vector.shape_cast %31 : vector<1xf32> to vector<1x1x1xf32>
    %33 = vector.extract %32[0, 0, 0] : f32 from vector<1x1x1xf32>
    %cst_12 = arith.constant 5.000000e-01 : f32
    %34 = arith.mulf %cst_12, %29 : f32
    %35 = vector.broadcast %34 : f32 to vector<10x1xf32>
    %36 = arith.cmpf oge, %23, %35 : vector<10x1xf32>
    %37 = arith.extui %36 : vector<10x1xi1> to vector<10x1xi32>
    %38 = arith.sitofp %37 : vector<10x1xi32> to vector<10x1xf32>
    %cst_13 = arith.constant 5.000000e-01 : f32
    %39 = arith.mulf %cst_13, %33 : f32
    %40 = vector.broadcast %39 : f32 to vector<10x1xf32>
    %41 = arith.cmpf oge, %25, %40 : vector<10x1xf32>
    %42 = arith.extui %41 : vector<10x1xi1> to vector<10x1xi32>
    %43 = arith.sitofp %42 : vector<10x1xi32> to vector<10x1xf32>
    %44 = vector.shape_cast %13 : vector<1x98xi1> to vector<1x98xi1>
    %45 = vector.broadcast %44 : vector<1x98xi1> to vector<10x98xi1>
    %46 = vector.shape_cast %38 : vector<10x1xf32> to vector<10x1xf32>
    %47 = vector.broadcast %46 : vector<10x1xf32> to vector<10x98xf32>
    %48 = vector.shape_cast %43 : vector<10x1xf32> to vector<10x1xf32>
    %49 = vector.broadcast %48 : vector<10x1xf32> to vector<10x98xf32>
    %50 = arith.select %45, %47, %49 : vector<10x98xi1>, vector<10x98xf32>
    %51 = tpu.iota {dimensions = array<i32: 0>} : vector<10x1xi32>
    %c9_i32 = arith.constant 9 : i32
    %52 = vector.broadcast %c9_i32 : i32 to vector<10x1xi32>
    %53 = arith.cmpi eq, %51, %52 : vector<10x1xi32>
    %54 = arith.mulf %50, %10 : vector<10x98xf32>
    %cst_14 = arith.constant 1.000000e+00 : f32
    %55 = vector.shape_cast %53 : vector<10x1xi1> to vector<10x1xi1>
    %56 = vector.broadcast %55 : vector<10x1xi1> to vector<10x98xi1>
    %57 = vector.broadcast %cst_14 : f32 to vector<10x98xf32>
    %58 = arith.select %56, %57, %54 : vector<10x98xi1>, vector<10x98xf32>
    %cst_15 = arith.constant 0.000000e+00 : f32
    %59 = vector.broadcast %cst_15 : f32 to vector<64x2xf32>
    %60 = vector.extract_strided_slice %58 {offsets = [0, 0], sizes = [1, 98], strides = [1, 1]} : vector<10x98xf32> to vector<1x98xf32>
    %61 = vector.broadcast %60 : vector<1x98xf32> to vector<64x98xf32>
    %62 = arith.mulf %0, %61 : vector<64x98xf32>
    %cst_16 = arith.constant 0xFF800000 : f32
    %63 = vector.shape_cast %13 : vector<1x98xi1> to vector<1x98xi1>
    %64 = vector.broadcast %63 : vector<1x98xi1> to vector<64x98xi1>
    %65 = vector.broadcast %cst_16 : f32 to vector<64x98xf32>
    %66 = arith.select %64, %62, %65 : vector<64x98xi1>, vector<64x98xf32>
    %cst_17 = arith.constant dense<0xFF800000> : vector<64xf32>
    %67 = vector.multi_reduction <maximumf>, %66, %cst_17 [1] : vector<64x98xf32> to vector<64xf32>
    %68 = vector.shape_cast %67 : vector<64xf32> to vector<64x1xf32>
    %cst_18 = arith.constant 0xFF800000 : f32
    %69 = vector.shape_cast %13 : vector<1x98xi1> to vector<1x98xi1>
    %70 = vector.broadcast %69 : vector<1x98xi1> to vector<64x98xi1>
    %71 = vector.broadcast %cst_18 : f32 to vector<64x98xf32>
    %72 = arith.select %70, %71, %62 : vector<64x98xi1>, vector<64x98xf32>
    %cst_19 = arith.constant dense<0xFF800000> : vector<64xf32>
    %73 = vector.multi_reduction <maximumf>, %72, %cst_19 [1] : vector<64x98xf32> to vector<64xf32>
    %74 = vector.shape_cast %73 : vector<64xf32> to vector<64x1xf32>
    %75 = tpu.concatenate %68, %74 in 1 : vector<64x1xf32>, vector<64x1xf32> -> vector<64x2xf32>
    %c0_20 = arith.constant 0 : index
    %c0_21 = arith.constant 0 : index
    %c0_22 = arith.constant 0 : index
    %76 = vector.load %arg3[%c0_20, %c0_21, %c0_22] : memref<10x64x64xf32, #tpu.memory_space<vmem>>, vector<1x64x64xf32>
    %77 = vector.shape_cast %76 : vector<1x64x64xf32> to vector<64x64xf32>
    %cst_23 = arith.constant dense<0.000000e+00> : vector<64x2xf32>
    %78 = tpu.matmul %77, %75, %cst_23 {dimension_numbers = #tpu.dot_dimension_numbers<[1], [0], [0], [1], [0, 0, 1, 1], [], []>} : vector<64x64xf32>, vector<64x2xf32>, vector<64x2xf32> -> vector<64x2xf32>
    %79 = arith.addf %59, %78 : vector<64x2xf32>
    %80 = vector.extract_strided_slice %58 {offsets = [1, 0], sizes = [1, 98], strides = [1, 1]} : vector<10x98xf32> to vector<1x98xf32>
    %81 = vector.broadcast %80 : vector<1x98xf32> to vector<64x98xf32>
    %82 = arith.mulf %0, %81 : vector<64x98xf32>
    %cst_24 = arith.constant 0xFF800000 : f32
    %83 = vector.shape_cast %13 : vector<1x98xi1> to vector<1x98xi1>
    %84 = vector.broadcast %83 : vector<1x98xi1> to vector<64x98xi1>
    %85 = vector.broadcast %cst_24 : f32 to vector<64x98xf32>
    %86 = arith.select %84, %82, %85 : vector<64x98xi1>, vector<64x98xf32>
    %cst_25 = arith.constant dense<0xFF800000> : vector<64xf32>
    %87 = vector.multi_reduction <maximumf>, %86, %cst_25 [1] : vector<64x98xf32> to vector<64xf32>
    %88 = vector.shape_cast %87 : vector<64xf32> to vector<64x1xf32>
    %cst_26 = arith.constant 0xFF800000 : f32
    %89 = vector.shape_cast %13 : vector<1x98xi1> to vector<1x98xi1>
    %90 = vector.broadcast %89 : vector<1x98xi1> to vector<64x98xi1>
    %91 = vector.broadcast %cst_26 : f32 to vector<64x98xf32>
    %92 = arith.select %90, %91, %82 : vector<64x98xi1>, vector<64x98xf32>
    %cst_27 = arith.constant dense<0xFF800000> : vector<64xf32>
    %93 = vector.multi_reduction <maximumf>, %92, %cst_27 [1] : vector<64x98xf32> to vector<64xf32>
    %94 = vector.shape_cast %93 : vector<64xf32> to vector<64x1xf32>
    %95 = tpu.concatenate %88, %94 in 1 : vector<64x1xf32>, vector<64x1xf32> -> vector<64x2xf32>
    %c1 = arith.constant 1 : index
    %c0_28 = arith.constant 0 : index
    %c0_29 = arith.constant 0 : index
    %96 = vector.load %arg3[%c1, %c0_28, %c0_29] : memref<10x64x64xf32, #tpu.memory_space<vmem>>, vector<1x64x64xf32>
    %97 = vector.shape_cast %96 : vector<1x64x64xf32> to vector<64x64xf32>
    %cst_30 = arith.constant dense<0.000000e+00> : vector<64x2xf32>
    %98 = tpu.matmul %97, %95, %cst_30 {dimension_numbers = #tpu.dot_dimension_numbers<[1], [0], [0], [1], [0, 0, 1, 1], [], []>} : vector<64x64xf32>, vector<64x2xf32>, vector<64x2xf32> -> vector<64x2xf32>
    %99 = arith.addf %79, %98 : vector<64x2xf32>
    %100 = vector.extract_strided_slice %58 {offsets = [2, 0], sizes = [1, 98], strides = [1, 1]} : vector<10x98xf32> to vector<1x98xf32>
    %101 = vector.broadcast %100 : vector<1x98xf32> to vector<64x98xf32>
    %102 = arith.mulf %0, %101 : vector<64x98xf32>
    %cst_31 = arith.constant 0xFF800000 : f32
    %103 = vector.shape_cast %13 : vector<1x98xi1> to vector<1x98xi1>
    %104 = vector.broadcast %103 : vector<1x98xi1> to vector<64x98xi1>
    %105 = vector.broadcast %cst_31 : f32 to vector<64x98xf32>
    %106 = arith.select %104, %102, %105 : vector<64x98xi1>, vector<64x98xf32>
    %cst_32 = arith.constant dense<0xFF800000> : vector<64xf32>
    %107 = vector.multi_reduction <maximumf>, %106, %cst_32 [1] : vector<64x98xf32> to vector<64xf32>
    %108 = vector.shape_cast %107 : vector<64xf32> to vector<64x1xf32>
    %cst_33 = arith.constant 0xFF800000 : f32
    %109 = vector.shape_cast %13 : vector<1x98xi1> to vector<1x98xi1>
    %110 = vector.broadcast %109 : vector<1x98xi1> to vector<64x98xi1>
    %111 = vector.broadcast %cst_33 : f32 to vector<64x98xf32>
    %112 = arith.select %110, %111, %102 : vector<64x98xi1>, vector<64x98xf32>
    %cst_34 = arith.constant dense<0xFF800000> : vector<64xf32>
    %113 = vector.multi_reduction <maximumf>, %112, %cst_34 [1] : vector<64x98xf32> to vector<64xf32>
    %114 = vector.shape_cast %113 : vector<64xf32> to vector<64x1xf32>
    %115 = tpu.concatenate %108, %114 in 1 : vector<64x1xf32>, vector<64x1xf32> -> vector<64x2xf32>
    %c2 = arith.constant 2 : index
    %c0_35 = arith.constant 0 : index
    %c0_36 = arith.constant 0 : index
    %116 = vector.load %arg3[%c2, %c0_35, %c0_36] : memref<10x64x64xf32, #tpu.memory_space<vmem>>, vector<1x64x64xf32>
    %117 = vector.shape_cast %116 : vector<1x64x64xf32> to vector<64x64xf32>
    %cst_37 = arith.constant dense<0.000000e+00> : vector<64x2xf32>
    %118 = tpu.matmul %117, %115, %cst_37 {dimension_numbers = #tpu.dot_dimension_numbers<[1], [0], [0], [1], [0, 0, 1, 1], [], []>} : vector<64x64xf32>, vector<64x2xf32>, vector<64x2xf32> -> vector<64x2xf32>
    %119 = arith.addf %99, %118 : vector<64x2xf32>
    %120 = vector.extract_strided_slice %58 {offsets = [3, 0], sizes = [1, 98], strides = [1, 1]} : vector<10x98xf32> to vector<1x98xf32>
    %121 = vector.broadcast %120 : vector<1x98xf32> to vector<64x98xf32>
    %122 = arith.mulf %0, %121 : vector<64x98xf32>
    %cst_38 = arith.constant 0xFF800000 : f32
    %123 = vector.shape_cast %13 : vector<1x98xi1> to vector<1x98xi1>
    %124 = vector.broadcast %123 : vector<1x98xi1> to vector<64x98xi1>
    %125 = vector.broadcast %cst_38 : f32 to vector<64x98xf32>
    %126 = arith.select %124, %122, %125 : vector<64x98xi1>, vector<64x98xf32>
    %cst_39 = arith.constant dense<0xFF800000> : vector<64xf32>
    %127 = vector.multi_reduction <maximumf>, %126, %cst_39 [1] : vector<64x98xf32> to vector<64xf32>
    %128 = vector.shape_cast %127 : vector<64xf32> to vector<64x1xf32>
    %cst_40 = arith.constant 0xFF800000 : f32
    %129 = vector.shape_cast %13 : vector<1x98xi1> to vector<1x98xi1>
    %130 = vector.broadcast %129 : vector<1x98xi1> to vector<64x98xi1>
    %131 = vector.broadcast %cst_40 : f32 to vector<64x98xf32>
    %132 = arith.select %130, %131, %122 : vector<64x98xi1>, vector<64x98xf32>
    %cst_41 = arith.constant dense<0xFF800000> : vector<64xf32>
    %133 = vector.multi_reduction <maximumf>, %132, %cst_41 [1] : vector<64x98xf32> to vector<64xf32>
    %134 = vector.shape_cast %133 : vector<64xf32> to vector<64x1xf32>
    %135 = tpu.concatenate %128, %134 in 1 : vector<64x1xf32>, vector<64x1xf32> -> vector<64x2xf32>
    %c3 = arith.constant 3 : index
    %c0_42 = arith.constant 0 : index
    %c0_43 = arith.constant 0 : index
    %136 = vector.load %arg3[%c3, %c0_42, %c0_43] : memref<10x64x64xf32, #tpu.memory_space<vmem>>, vector<1x64x64xf32>
    %137 = vector.shape_cast %136 : vector<1x64x64xf32> to vector<64x64xf32>
    %cst_44 = arith.constant dense<0.000000e+00> : vector<64x2xf32>
    %138 = tpu.matmul %137, %135, %cst_44 {dimension_numbers = #tpu.dot_dimension_numbers<[1], [0], [0], [1], [0, 0, 1, 1], [], []>} : vector<64x64xf32>, vector<64x2xf32>, vector<64x2xf32> -> vector<64x2xf32>
    %139 = arith.addf %119, %138 : vector<64x2xf32>
    %140 = vector.extract_strided_slice %58 {offsets = [4, 0], sizes = [1, 98], strides = [1, 1]} : vector<10x98xf32> to vector<1x98xf32>
    %141 = vector.broadcast %140 : vector<1x98xf32> to vector<64x98xf32>
    %142 = arith.mulf %0, %141 : vector<64x98xf32>
    %cst_45 = arith.constant 0xFF800000 : f32
    %143 = vector.shape_cast %13 : vector<1x98xi1> to vector<1x98xi1>
    %144 = vector.broadcast %143 : vector<1x98xi1> to vector<64x98xi1>
    %145 = vector.broadcast %cst_45 : f32 to vector<64x98xf32>
    %146 = arith.select %144, %142, %145 : vector<64x98xi1>, vector<64x98xf32>
    %cst_46 = arith.constant dense<0xFF800000> : vector<64xf32>
    %147 = vector.multi_reduction <maximumf>, %146, %cst_46 [1] : vector<64x98xf32> to vector<64xf32>
    %148 = vector.shape_cast %147 : vector<64xf32> to vector<64x1xf32>
    %cst_47 = arith.constant 0xFF800000 : f32
    %149 = vector.shape_cast %13 : vector<1x98xi1> to vector<1x98xi1>
    %150 = vector.broadcast %149 : vector<1x98xi1> to vector<64x98xi1>
    %151 = vector.broadcast %cst_47 : f32 to vector<64x98xf32>
    %152 = arith.select %150, %151, %142 : vector<64x98xi1>, vector<64x98xf32>
    %cst_48 = arith.constant dense<0xFF800000> : vector<64xf32>
    %153 = vector.multi_reduction <maximumf>, %152, %cst_48 [1] : vector<64x98xf32> to vector<64xf32>
    %154 = vector.shape_cast %153 : vector<64xf32> to vector<64x1xf32>
    %155 = tpu.concatenate %148, %154 in 1 : vector<64x1xf32>, vector<64x1xf32> -> vector<64x2xf32>
    %c4 = arith.constant 4 : index
    %c0_49 = arith.constant 0 : index
    %c0_50 = arith.constant 0 : index
    %156 = vector.load %arg3[%c4, %c0_49, %c0_50] : memref<10x64x64xf32, #tpu.memory_space<vmem>>, vector<1x64x64xf32>
    %157 = vector.shape_cast %156 : vector<1x64x64xf32> to vector<64x64xf32>
    %cst_51 = arith.constant dense<0.000000e+00> : vector<64x2xf32>
    %158 = tpu.matmul %157, %155, %cst_51 {dimension_numbers = #tpu.dot_dimension_numbers<[1], [0], [0], [1], [0, 0, 1, 1], [], []>} : vector<64x64xf32>, vector<64x2xf32>, vector<64x2xf32> -> vector<64x2xf32>
    %159 = arith.addf %139, %158 : vector<64x2xf32>
    %160 = vector.extract_strided_slice %58 {offsets = [5, 0], sizes = [1, 98], strides = [1, 1]} : vector<10x98xf32> to vector<1x98xf32>
    %161 = vector.broadcast %160 : vector<1x98xf32> to vector<64x98xf32>
    %162 = arith.mulf %0, %161 : vector<64x98xf32>
    %cst_52 = arith.constant 0xFF800000 : f32
    %163 = vector.shape_cast %13 : vector<1x98xi1> to vector<1x98xi1>
    %164 = vector.broadcast %163 : vector<1x98xi1> to vector<64x98xi1>
    %165 = vector.broadcast %cst_52 : f32 to vector<64x98xf32>
    %166 = arith.select %164, %162, %165 : vector<64x98xi1>, vector<64x98xf32>
    %cst_53 = arith.constant dense<0xFF800000> : vector<64xf32>
    %167 = vector.multi_reduction <maximumf>, %166, %cst_53 [1] : vector<64x98xf32> to vector<64xf32>
    %168 = vector.shape_cast %167 : vector<64xf32> to vector<64x1xf32>
    %cst_54 = arith.constant 0xFF800000 : f32
    %169 = vector.shape_cast %13 : vector<1x98xi1> to vector<1x98xi1>
    %170 = vector.broadcast %169 : vector<1x98xi1> to vector<64x98xi1>
    %171 = vector.broadcast %cst_54 : f32 to vector<64x98xf32>
    %172 = arith.select %170, %171, %162 : vector<64x98xi1>, vector<64x98xf32>
    %cst_55 = arith.constant dense<0xFF800000> : vector<64xf32>
    %173 = vector.multi_reduction <maximumf>, %172, %cst_55 [1] : vector<64x98xf32> to vector<64xf32>
    %174 = vector.shape_cast %173 : vector<64xf32> to vector<64x1xf32>
    %175 = tpu.concatenate %168, %174 in 1 : vector<64x1xf32>, vector<64x1xf32> -> vector<64x2xf32>
    %c5 = arith.constant 5 : index
    %c0_56 = arith.constant 0 : index
    %c0_57 = arith.constant 0 : index
    %176 = vector.load %arg3[%c5, %c0_56, %c0_57] : memref<10x64x64xf32, #tpu.memory_space<vmem>>, vector<1x64x64xf32>
    %177 = vector.shape_cast %176 : vector<1x64x64xf32> to vector<64x64xf32>
    %cst_58 = arith.constant dense<0.000000e+00> : vector<64x2xf32>
    %178 = tpu.matmul %177, %175, %cst_58 {dimension_numbers = #tpu.dot_dimension_numbers<[1], [0], [0], [1], [0, 0, 1, 1], [], []>} : vector<64x64xf32>, vector<64x2xf32>, vector<64x2xf32> -> vector<64x2xf32>
    %179 = arith.addf %159, %178 : vector<64x2xf32>
    %180 = vector.extract_strided_slice %58 {offsets = [6, 0], sizes = [1, 98], strides = [1, 1]} : vector<10x98xf32> to vector<1x98xf32>
    %181 = vector.broadcast %180 : vector<1x98xf32> to vector<64x98xf32>
    %182 = arith.mulf %0, %181 : vector<64x98xf32>
    %cst_59 = arith.constant 0xFF800000 : f32
    %183 = vector.shape_cast %13 : vector<1x98xi1> to vector<1x98xi1>
    %184 = vector.broadcast %183 : vector<1x98xi1> to vector<64x98xi1>
    %185 = vector.broadcast %cst_59 : f32 to vector<64x98xf32>
    %186 = arith.select %184, %182, %185 : vector<64x98xi1>, vector<64x98xf32>
    %cst_60 = arith.constant dense<0xFF800000> : vector<64xf32>
    %187 = vector.multi_reduction <maximumf>, %186, %cst_60 [1] : vector<64x98xf32> to vector<64xf32>
    %188 = vector.shape_cast %187 : vector<64xf32> to vector<64x1xf32>
    %cst_61 = arith.constant 0xFF800000 : f32
    %189 = vector.shape_cast %13 : vector<1x98xi1> to vector<1x98xi1>
    %190 = vector.broadcast %189 : vector<1x98xi1> to vector<64x98xi1>
    %191 = vector.broadcast %cst_61 : f32 to vector<64x98xf32>
    %192 = arith.select %190, %191, %182 : vector<64x98xi1>, vector<64x98xf32>
    %cst_62 = arith.constant dense<0xFF800000> : vector<64xf32>
    %193 = vector.multi_reduction <maximumf>, %192, %cst_62 [1] : vector<64x98xf32> to vector<64xf32>
    %194 = vector.shape_cast %193 : vector<64xf32> to vector<64x1xf32>
    %195 = tpu.concatenate %188, %194 in 1 : vector<64x1xf32>, vector<64x1xf32> -> vector<64x2xf32>
    %c6 = arith.constant 6 : index
    %c0_63 = arith.constant 0 : index
    %c0_64 = arith.constant 0 : index
    %196 = vector.load %arg3[%c6, %c0_63, %c0_64] : memref<10x64x64xf32, #tpu.memory_space<vmem>>, vector<1x64x64xf32>
    %197 = vector.shape_cast %196 : vector<1x64x64xf32> to vector<64x64xf32>
    %cst_65 = arith.constant dense<0.000000e+00> : vector<64x2xf32>
    %198 = tpu.matmul %197, %195, %cst_65 {dimension_numbers = #tpu.dot_dimension_numbers<[1], [0], [0], [1], [0, 0, 1, 1], [], []>} : vector<64x64xf32>, vector<64x2xf32>, vector<64x2xf32> -> vector<64x2xf32>
    %199 = arith.addf %179, %198 : vector<64x2xf32>
    %200 = vector.extract_strided_slice %58 {offsets = [7, 0], sizes = [1, 98], strides = [1, 1]} : vector<10x98xf32> to vector<1x98xf32>
    %201 = vector.broadcast %200 : vector<1x98xf32> to vector<64x98xf32>
    %202 = arith.mulf %0, %201 : vector<64x98xf32>
    %cst_66 = arith.constant 0xFF800000 : f32
    %203 = vector.shape_cast %13 : vector<1x98xi1> to vector<1x98xi1>
    %204 = vector.broadcast %203 : vector<1x98xi1> to vector<64x98xi1>
    %205 = vector.broadcast %cst_66 : f32 to vector<64x98xf32>
    %206 = arith.select %204, %202, %205 : vector<64x98xi1>, vector<64x98xf32>
    %cst_67 = arith.constant dense<0xFF800000> : vector<64xf32>
    %207 = vector.multi_reduction <maximumf>, %206, %cst_67 [1] : vector<64x98xf32> to vector<64xf32>
    %208 = vector.shape_cast %207 : vector<64xf32> to vector<64x1xf32>
    %cst_68 = arith.constant 0xFF800000 : f32
    %209 = vector.shape_cast %13 : vector<1x98xi1> to vector<1x98xi1>
    %210 = vector.broadcast %209 : vector<1x98xi1> to vector<64x98xi1>
    %211 = vector.broadcast %cst_68 : f32 to vector<64x98xf32>
    %212 = arith.select %210, %211, %202 : vector<64x98xi1>, vector<64x98xf32>
    %cst_69 = arith.constant dense<0xFF800000> : vector<64xf32>
    %213 = vector.multi_reduction <maximumf>, %212, %cst_69 [1] : vector<64x98xf32> to vector<64xf32>
    %214 = vector.shape_cast %213 : vector<64xf32> to vector<64x1xf32>
    %215 = tpu.concatenate %208, %214 in 1 : vector<64x1xf32>, vector<64x1xf32> -> vector<64x2xf32>
    %c7 = arith.constant 7 : index
    %c0_70 = arith.constant 0 : index
    %c0_71 = arith.constant 0 : index
    %216 = vector.load %arg3[%c7, %c0_70, %c0_71] : memref<10x64x64xf32, #tpu.memory_space<vmem>>, vector<1x64x64xf32>
    %217 = vector.shape_cast %216 : vector<1x64x64xf32> to vector<64x64xf32>
    %cst_72 = arith.constant dense<0.000000e+00> : vector<64x2xf32>
    %218 = tpu.matmul %217, %215, %cst_72 {dimension_numbers = #tpu.dot_dimension_numbers<[1], [0], [0], [1], [0, 0, 1, 1], [], []>} : vector<64x64xf32>, vector<64x2xf32>, vector<64x2xf32> -> vector<64x2xf32>
    %219 = arith.addf %199, %218 : vector<64x2xf32>
    %220 = vector.extract_strided_slice %58 {offsets = [8, 0], sizes = [1, 98], strides = [1, 1]} : vector<10x98xf32> to vector<1x98xf32>
    %221 = vector.broadcast %220 : vector<1x98xf32> to vector<64x98xf32>
    %222 = arith.mulf %0, %221 : vector<64x98xf32>
    %cst_73 = arith.constant 0xFF800000 : f32
    %223 = vector.shape_cast %13 : vector<1x98xi1> to vector<1x98xi1>
    %224 = vector.broadcast %223 : vector<1x98xi1> to vector<64x98xi1>
    %225 = vector.broadcast %cst_73 : f32 to vector<64x98xf32>
    %226 = arith.select %224, %222, %225 : vector<64x98xi1>, vector<64x98xf32>
    %cst_74 = arith.constant dense<0xFF800000> : vector<64xf32>
    %227 = vector.multi_reduction <maximumf>, %226, %cst_74 [1] : vector<64x98xf32> to vector<64xf32>
    %228 = vector.shape_cast %227 : vector<64xf32> to vector<64x1xf32>
    %cst_75 = arith.constant 0xFF800000 : f32
    %229 = vector.shape_cast %13 : vector<1x98xi1> to vector<1x98xi1>
    %230 = vector.broadcast %229 : vector<1x98xi1> to vector<64x98xi1>
    %231 = vector.broadcast %cst_75 : f32 to vector<64x98xf32>
    %232 = arith.select %230, %231, %222 : vector<64x98xi1>, vector<64x98xf32>
    %cst_76 = arith.constant dense<0xFF800000> : vector<64xf32>
    %233 = vector.multi_reduction <maximumf>, %232, %cst_76 [1] : vector<64x98xf32> to vector<64xf32>
    %234 = vector.shape_cast %233 : vector<64xf32> to vector<64x1xf32>
    %235 = tpu.concatenate %228, %234 in 1 : vector<64x1xf32>, vector<64x1xf32> -> vector<64x2xf32>
    %c8 = arith.constant 8 : index
    %c0_77 = arith.constant 0 : index
    %c0_78 = arith.constant 0 : index
    %236 = vector.load %arg3[%c8, %c0_77, %c0_78] : memref<10x64x64xf32, #tpu.memory_space<vmem>>, vector<1x64x64xf32>
    %237 = vector.shape_cast %236 : vector<1x64x64xf32> to vector<64x64xf32>
    %cst_79 = arith.constant dense<0.000000e+00> : vector<64x2xf32>
    %238 = tpu.matmul %237, %235, %cst_79 {dimension_numbers = #tpu.dot_dimension_numbers<[1], [0], [0], [1], [0, 0, 1, 1], [], []>} : vector<64x64xf32>, vector<64x2xf32>, vector<64x2xf32> -> vector<64x2xf32>
    %239 = arith.addf %219, %238 : vector<64x2xf32>
    %240 = vector.extract_strided_slice %58 {offsets = [9, 0], sizes = [1, 98], strides = [1, 1]} : vector<10x98xf32> to vector<1x98xf32>
    %241 = vector.broadcast %240 : vector<1x98xf32> to vector<64x98xf32>
    %242 = arith.mulf %0, %241 : vector<64x98xf32>
    %cst_80 = arith.constant 0xFF800000 : f32
    %243 = vector.shape_cast %13 : vector<1x98xi1> to vector<1x98xi1>
    %244 = vector.broadcast %243 : vector<1x98xi1> to vector<64x98xi1>
    %245 = vector.broadcast %cst_80 : f32 to vector<64x98xf32>
    %246 = arith.select %244, %242, %245 : vector<64x98xi1>, vector<64x98xf32>
    %cst_81 = arith.constant dense<0xFF800000> : vector<64xf32>
    %247 = vector.multi_reduction <maximumf>, %246, %cst_81 [1] : vector<64x98xf32> to vector<64xf32>
    %248 = vector.shape_cast %247 : vector<64xf32> to vector<64x1xf32>
    %cst_82 = arith.constant 0xFF800000 : f32
    %249 = vector.shape_cast %13 : vector<1x98xi1> to vector<1x98xi1>
    %250 = vector.broadcast %249 : vector<1x98xi1> to vector<64x98xi1>
    %251 = vector.broadcast %cst_82 : f32 to vector<64x98xf32>
    %252 = arith.select %250, %251, %242 : vector<64x98xi1>, vector<64x98xf32>
    %cst_83 = arith.constant dense<0xFF800000> : vector<64xf32>
    %253 = vector.multi_reduction <maximumf>, %252, %cst_83 [1] : vector<64x98xf32> to vector<64xf32>
    %254 = vector.shape_cast %253 : vector<64xf32> to vector<64x1xf32>
    %255 = tpu.concatenate %248, %254 in 1 : vector<64x1xf32>, vector<64x1xf32> -> vector<64x2xf32>
    %c9 = arith.constant 9 : index
    %c0_84 = arith.constant 0 : index
    %c0_85 = arith.constant 0 : index
    %256 = vector.load %arg3[%c9, %c0_84, %c0_85] : memref<10x64x64xf32, #tpu.memory_space<vmem>>, vector<1x64x64xf32>
    %257 = vector.shape_cast %256 : vector<1x64x64xf32> to vector<64x64xf32>
    %cst_86 = arith.constant dense<0.000000e+00> : vector<64x2xf32>
    %258 = tpu.matmul %257, %255, %cst_86 {dimension_numbers = #tpu.dot_dimension_numbers<[1], [0], [0], [1], [0, 0, 1, 1], [], []>} : vector<64x64xf32>, vector<64x2xf32>, vector<64x2xf32> -> vector<64x2xf32>
    %259 = arith.addf %239, %258 : vector<64x2xf32>
    %c0_87 = arith.constant 0 : index
    %c0_88 = arith.constant 0 : index
    %260 = vector.load %arg4[%c0_87, %c0_88] : memref<8x64xf32, #tpu.memory_space<vmem>>, vector<8x64xf32>
    %cst_89 = arith.constant dense<0.000000e+00> : vector<8x2xf32>
    %261 = tpu.matmul %260, %259, %cst_89 {dimension_numbers = #tpu.dot_dimension_numbers<[1], [0], [0], [1], [0, 0, 1, 1], [], []>} : vector<8x64xf32>, vector<64x2xf32>, vector<8x2xf32> -> vector<8x2xf32>
    %c0_90 = arith.constant 0 : index
    %c0_91 = arith.constant 0 : index
    %262 = vector.load %arg5[%c0_90, %c0_91] : memref<8x2xf32, #tpu.memory_space<vmem>>, vector<8x2xf32>
    tpu.vector_store %arg5[%c0_90, %c0_91], %261 {strides = array<i32>} : memref<8x2xf32, #tpu.memory_space<vmem>>, vector<8x2xf32>,
    return
  }
}

</mosaic_0001>

<llo_original>
// kernel: gcn_resnet_forward.1
$region0: #{gcn_resnet_forward.1}
  #allocation0 [shape = 'u32[]', space=smem, size = 0x4, offset = 0x4, fixed_abs, tag = 'smem constant byte address 0x4 - core index']
  #allocation1 [shape = 'u32[144,128]{1,0:T(1,128)}', space=vmem, size = 0x12000, scoped, tag = 'internal scratch']
  %s0 = inlined_call_operand.vmem [shape: f32[64,98], index: 0, kind: input, shape index: {}]
  %s1 = inlined_call_operand.vmem [shape: f32[10,64], index: 1, kind: input, shape index: {}]
  %s2 = inlined_call_operand.vmem [shape: f32[10,1], index: 2, kind: input, shape index: {}]
  %s3 = inlined_call_operand.hbm [shape: f32[10,64,64], index: 3, kind: input, shape index: {}]
  %s4 = inlined_call_operand.vmem [shape: f32[8,64], index: 4, kind: input, shape index: {}]
  %s5 = inlined_call_operand.vmem [shape: f32[8,2], index: 5, kind: output, shape index: {}]
  %s6 = sld [smem:[#allocation0]]
  $region34: #{gcn_resnet_forward.1} parent=0
    _
  %s8 = ssub.s32 1, %s6
  %s9 = scalar_select 0, %s8, %s6
  $region1: #{gcn_resnet_forward.1} parent=0
    #allocation2 [shape = 'u8[327680]{0}', space=vmem, size = 0x50000, scoped, tag = 'input window, operand 3, single buffered']
    #allocation3 [shape = 's32[1]{0}', space=sflag, size = 0x4, scoped, tag = 'scoped memory for gcn_resnet_forward.1']
    %10 = vsyncpa [#allocation3], 0
    // Predicated region
    $region2: #{gcn_resnet_forward.1} parent=1 // pred_check
      _
    $region3: #{gcn_resnet_forward.1} parent=1 // pred_check_branch
      %12 = sbr.rel (0) target = $region5
    $region4: #{gcn_resnet_forward.1} parent=1 // pred_region
      _
    $region5: #{gcn_resnet_forward.1} parent=1 // pred_fallthru
      _
    // Predicated region
    $region6: #{gcn_resnet_forward.1} parent=1 // pred_check
      _
    $region7: #{gcn_resnet_forward.1} parent=1 // pred_check_branch
      %14 = sbr.rel (0) target = $region9
    $region8: #{gcn_resnet_forward.1} parent=1 // pred_region
      _
    $region9: #{gcn_resnet_forward.1} parent=1 // pred_fallthru
      _
    // Predicated region
    $region10: #{gcn_resnet_forward.1} parent=1 // pred_check
      _
    $region11: #{gcn_resnet_forward.1} parent=1 // pred_check_branch
      %16 = sbr.rel (0) target = $region13
    $region12: #{gcn_resnet_forward.1} parent=1 // pred_region
      _
    $region13: #{gcn_resnet_forward.1} parent=1 // pred_fallthru
      _
    // Predicated region
    $region14: #{gcn_resnet_forward.1} parent=1 // pred_check
      _
    $region15: #{gcn_resnet_forward.1} parent=1 // pred_check_branch
      %18 = sbr.rel (0) target = $region17
    $region16: #{gcn_resnet_forward.1} parent=1 // pred_region
      %s20 = ssub.s32 10240, 10240
      %21 = vsyncadd [#allocation3], %s20
      %s22 = sshll.u32 [#allocation2], 4
      %s23 = int_to_ptr.vmem [resolvable:$true] %s22
      %28 = dma.hbm_to_vmem [thread:$0]  %s3, 10240, %s23, [#allocation3], 128, 128, 8
    $region17: #{gcn_resnet_forward.1} parent=1 // pred_fallthru
      _
    // Predicated region
    $region18: #{gcn_resnet_forward.1} parent=1 // pred_check
      _
    $region19: #{gcn_resnet_forward.1} parent=1 // pred_check_branch
      %30 = sbr.rel (0) target = $region21
    $region20: #{gcn_resnet_forward.1} parent=1 // pred_region
      _
    $region21: #{gcn_resnet_forward.1} parent=1 // pred_fallthru
      _
    // Predicated region
    $region22: #{gcn_resnet_forward.1} parent=1 // pred_check
      _
    $region23: #{gcn_resnet_forward.1} parent=1 // pred_check_branch
      %32 = sbr.rel (0) target = $region25
    $region24: #{gcn_resnet_forward.1} parent=1 // pred_region
      %33 = dma.done [#allocation3], 10240
    $region25: #{gcn_resnet_forward.1} parent=1 // pred_fallthru
      _
    %v34 = vld [vmem:[%s0] sm:$0xff]
    %v35 = vld [vmem:[%s0 + $0x8] sm:$0xff]
    %v36 = vld [vmem:[%s0 + $0x10] sm:$0xff]
    %v37 = vld [vmem:[%s0 + $0x18] sm:$0xff]
    %v38 = vld [vmem:[%s0 + $0x20] sm:$0xff]
    %v39 = vld [vmem:[%s0 + $0x28] sm:$0xff]
    %v40 = vld [vmem:[%s0 + $0x30] sm:$0xff]
    %v41 = vld [vmem:[%s0 + $0x38] sm:$0xff]
    %v42 = vld [vmem:[%s1] sm:$0xff]
    %v43 = vld [vmem:[%s1 + $0x8] sm:$0x3]
    %v44 = vld [vmem:[%s2] sm:$0xff]
    %v45 = vld [vmem:[%s2 + $0x8] sm:$0x3]
    %47 = vset.pattern.permute.xlu0 0
    %48 = vperm.xlu0 %47, %v44
    %v49 = vpop.permute.xlu0 %48
    %52 = vset.pattern.permute.xlu0 0
    %53 = vperm.xlu0 %52, %v45
    %v54 = vpop.permute.xlu0 %53
    %vm56 = vcmask 523264
    %v58 = vsel %vm56, %v42, 0
    %v61 = vsel %vm56, %v43, 0
    %63 = vmatprep.subr.mxu0 0.0
    %64 = vmatpush1.msra.mxu0 0.0
    %65 = vmatprep.subr.mxu0 0.0
    %66 = vmatpush1.msra.mxu0 0.0
    %67 = vmatprep.subr.mxu0 0.0
    %68 = vmatpush1.msra.mxu0 0.0
    %69 = vmatprep.subr.mxu0 0.0
    %70 = vmatpush1.msra.mxu0 0.0
    %71 = vmatprep.subr.mxu0 0.0
    %72 = vmatpush1.msra.mxu0 0.0
    %73 = vmatprep.subr.mxu0 0.0
    %74 = vmatpush1.msra.mxu0 0.0
    %75 = vmatprep.subr.mxu0 0.0
    %76 = vmatpush1.msra.mxu0 0.0
    %77 = vmatprep.subr.mxu0 0.0
    %78 = vmatpush1.msra.mxu0 0.0
    %79 = vmatprep.subr.mxu0 0.0
    %80 = vmatpush1.msra.mxu0 %v41
    %81 = vmatprep.subr.mxu0 0.0
    %82 = vmatpush1.msra.mxu0 %v40
    %83 = vmatprep.subr.mxu0 0.0
    %84 = vmatpush1.msra.mxu0 %v39
    %85 = vmatprep.subr.mxu0 0.0
    %86 = vmatpush1.msra.mxu0 %v38
    %87 = vmatprep.subr.mxu0 0.0
    %88 = vmatpush1.msra.mxu0 %v37
    %89 = vmatprep.subr.mxu0 0.0
    %90 = vmatpush1.msra.mxu0 %v36
    %91 = vmatprep.subr.mxu0 0.0
    %92 = vmatpush1.msra.mxu0 %v35
    %93 = vmatprep.subr.mxu0 0.0
    %94 = vmatpush1.msra.mxu0 %v34
    %95 = vmatprep.subr.mxu0 0.0
    %96 = vmatpush2.msra.mxu0 0.0
    %97 = vmatprep.subr.mxu0 0.0
    %98 = vmatpush2.msra.mxu0 0.0
    %99 = vmatprep.subr.mxu0 0.0
    %100 = vmatpush2.msra.mxu0 0.0
    %101 = vmatprep.subr.mxu0 0.0
    %102 = vmatpush2.msra.mxu0 0.0
    %103 = vmatprep.subr.mxu0 0.0
    %104 = vmatpush2.msra.mxu0 0.0
    %105 = vmatprep.subr.mxu0 0.0
    %106 = vmatpush2.msra.mxu0 0.0
    %107 = vmatprep.subr.mxu0 0.0
    %108 = vmatpush2.msra.mxu0 0.0
    %109 = vmatprep.subr.mxu0 0.0
    %110 = vmatpush2.msra.mxu0 0.0
    %111 = vmatprep.subr.mxu0 0.0
    %112 = vmatpush2.msra.mxu0 0.0
    %113 = vmatprep.subr.mxu0 0.0
    %114 = vmatpush2.msra.mxu0 0.0
    %115 = vmatprep.subr.mxu0 0.0
    %116 = vmatpush2.msra.mxu0 0.0
    %117 = vmatprep.subr.mxu0 0.0
    %118 = vmatpush2.msra.mxu0 0.0
    %119 = vmatprep.subr.mxu0 0.0
    %120 = vmatpush2.msra.mxu0 0.0
    %121 = vmatprep.subr.mxu0 0.0
    %122 = vmatpush2.msra.mxu0 0.0
    %123 = vmatprep.subr.mxu0 0.0
    %124 = vmatpush2.msra.mxu0 0.0
    %125 = vmatprep.subr.mxu0 0.0
    %126 = vmatpush2.msra.mxu0 0.0
    %127 = vmatprep.mubr.f32.mxu0 0.0
    %128 = vmatmul.mubr.f32.gmra.mxu0 %v58
    %v129 = vpop.f32.mrf.mxu0
    %v130 = vadd.f32 %v49, %v129
    %v131 = vpop.f32.mrf.mxu0
    %132 = vmatprep.mubr.f32.mxu0 0.0
    %133 = vmatmul.mubr.f32.gmra.mxu0 %v61
    %v134 = vpop.f32.mrf.mxu0
    %v135 = vadd.f32 %v54, %v134
    %v136 = vpop.f32.mrf.mxu0
    %137 = vdwg.mxu0
    %v138 = vxor.u32 %v130, 2147483648
    %v139 = vxor.u32 %v135, 2147483648
    %v140 = vmul.f32 %v138, 1.442695
    %v141 = vpow.pop %v140
    %v142 = vmul.f32 %v139, 1.442695
    %v143 = vpow.pop %v142
    %v144 = vadd.f32 %v141, 1.0
    %v145 = vadd.f32 %v143, 1.0
    %v146 = vrcp.pop %v144
    %v147 = vmul.f32 1.0, %v146
    %v148 = vrcp.pop %v145
    %v149 = vmul.f32 1.0, %v148
    %v150 = vlaneseq
    %v151 = vand.u32 %v150, 127
    %vm152 = vcmp.lt.s32.totalorder %v151, 49
    %v153 = vsel %vm152, 1, 0
    %vm154 = vcmp.eq.s32.totalorder %v153, 1
    %v155 = vsel %vm154, %v147, 0.0
    %v156 = vsel %vm154, %v149, 0.0
    %v157 = vsel %vm154, 0.0, %v147
    %v158 = vsel %vm154, 0.0, %v149
    %vm159 = vcmask 801792
    %v160 = vsel %vm159, %v155, -inf
    %161 = vmax.xlane.f32.xlu0 %v160
    %v162 = vpop.xlane.xlu0 %161
    %vm163 = vcmask 795648
    %v164 = vsel %vm163, %v156, -inf
    %165 = vmax.xlane.f32.xlu0 %v164
    %v166 = vpop.xlane.xlu0 %165
    %v167 = vsel %vm159, %v157, -inf
    %168 = vmax.xlane.f32.xlu0 %v167
    %v169 = vpop.xlane.xlu0 %168
    %v170 = vsel %vm163, %v158, -inf
    %171 = vmax.xlane.f32.xlu0 %v170
    %v172 = vpop.xlane.xlu0 %171
    %vm173 = vcmask 1041408
    %v174 = vsel %vm173, %v166, -inf
    %v175 = vmax.f32 %v162, %v174
    %v176 = vrot.slane %v175, 4
    %v177 = vmax.f32 %v175, %v176
    %v178 = vrot.slane %v177, 2
    %v179 = vmax.f32 %v177, %v178
    %v180 = vrot.slane %v179, 1
    %v181 = vmax.f32 %v179, %v180
    %s182 = vtos %v181
    %v183 = vsel %vm173, %v172, -inf
    %v184 = vmax.f32 %v169, %v183
    %v185 = vrot.slane %v184, 4
    %v186 = vmax.f32 %v184, %v185
    %v187 = vrot.slane %v186, 2
    %v188 = vmax.f32 %v186, %v187
    %v189 = vrot.slane %v188, 1
    %v190 = vmax.f32 %v188, %v189
    %s191 = vtos %v190
    %s192 = smul.f32 %s182, 0.5
    %v193 = vstv %s192
    %vm194 = vcmp.ge.f32.partialorder %v162, %v193
    %vm195 = vcmp.ge.f32.partialorder %v166, %v193
    %v196 = vsel %vm194, 1, 0
    %v197 = vsel %vm195, 1, 0
    %v198 = vcvt.s32.f32 %v196
    %v199 = vcvt.s32.f32 %v197
    %s200 = smul.f32 %s191, 0.5
    %v201 = vstv %s200
    %vm202 = vcmp.ge.f32.partialorder %v169, %v201
    %vm203 = vcmp.ge.f32.partialorder %v172, %v201
    %v204 = vsel %vm202, 1, 0
    %v205 = vsel %vm203, 1, 0
    %v206 = vcvt.s32.f32 %v204
    %v207 = vcvt.s32.f32 %v205
    %v208 = vsel %vm154, %v198, %v206
    %v209 = vsel %vm154, %v199, %v207
    %v210 = vlaneseq
    %v211 = vshrl.u32 %v210, 7
    %v212 = vadd.s32 %v211, 8
    %vm213 = vcmp.eq.s32.totalorder %v211, 9
    %vm214 = vcmp.eq.s32.totalorder %v212, 9
    %v215 = vmul.f32 %v208, %v147
    %v216 = vmul.f32 %v209, %v149
    %v217 = vsel %vm213, 1, 0
    %v218 = vsel %vm214, 1, 0
    %vm219 = vcmp.eq.s32.totalorder %v217, 1
    %vm220 = vcmp.eq.s32.totalorder %v218, 1
    %v221 = vsel %vm219, 1.0, %v215
    %v222 = vsel %vm220, 1.0, %v216
    %v223 = vlaneseq
    %v224 = vshrl.u32 %v223, 7
    %v225 = vsub.s32 0, %v224
    %v226 = vrot.slane %v221, %v225
    %v227 = vmul.f32 %v34, %v226
    %v228 = vmul.f32 %v35, %v226
    %v229 = vmul.f32 %v36, %v226
    %v230 = vmul.f32 %v37, %v226
    %v231 = vmul.f32 %v38, %v226
    %v232 = vmul.f32 %v39, %v226
    %v233 = vmul.f32 %v40, %v226
    %v234 = vmul.f32 %v41, %v226
    %v235 = vsel %vm154, %v227, -inf
    %v236 = vsel %vm154, %v228, -inf
    %v237 = vsel %vm154, %v229, -inf
    %v238 = vsel %vm154, %v230, -inf
    %v239 = vsel %vm154, %v231, -inf
    %v240 = vsel %vm154, %v232, -inf
    %v241 = vsel %vm154, %v233, -inf
    %v242 = vsel %vm154, %v234, -inf
    %v243 = vsel %vm159, %v235, -inf
    %244 = vmax.xlane.f32.xlu0 %v243
    %v245 = vpop.xlane.xlu0 %244
    %v246 = vsel %vm159, %v236, -inf
    %247 = vmax.xlane.f32.xlu0 %v246
    %v248 = vpop.xlane.xlu0 %247
    %v249 = vsel %vm159, %v237, -inf
    %250 = vmax.xlane.f32.xlu0 %v249
    %v251 = vpop.xlane.xlu0 %250
    %v252 = vsel %vm159, %v238, -inf
    %253 = vmax.xlane.f32.xlu0 %v252
    %v254 = vpop.xlane.xlu0 %253
    %v255 = vsel %vm159, %v239, -inf
    %256 = vmax.xlane.f32.xlu0 %v255
    %v257 = vpop.xlane.xlu0 %256
    %v258 = vsel %vm159, %v240, -inf
    %259 = vmax.xlane.f32.xlu0 %v258
    %v260 = vpop.xlane.xlu0 %259
    %v261 = vsel %vm159, %v241, -inf
    %262 = vmax.xlane.f32.xlu0 %v261
    %v263 = vpop.xlane.xlu0 %262
    %v264 = vsel %vm159, %v242, -inf
    %265 = vmax.xlane.f32.xlu0 %v264
    %v266 = vpop.xlane.xlu0 %265
    %v267 = vsel %vm154, -inf, %v227
    %v268 = vsel %vm154, -inf, %v228
    %v269 = vsel %vm154, -inf, %v229
    %v270 = vsel %vm154, -inf, %v230
    %v271 = vsel %vm154, -inf, %v231
    %v272 = vsel %vm154, -inf, %v232
    %v273 = vsel %vm154, -inf, %v233
    %v274 = vsel %vm154, -inf, %v234
    %v275 = vsel %vm159, %v267, -inf
    %276 = vmax.xlane.f32.xlu0 %v275
    %v277 = vpop.xlane.xlu0 %276
    %v278 = vsel %vm159, %v268, -inf
    %279 = vmax.xlane.f32.xlu0 %v278
    %v280 = vpop.xlane.xlu0 %279
    %v281 = vsel %vm159, %v269, -inf
    %282 = vmax.xlane.f32.xlu0 %v281
    %v283 = vpop.xlane.xlu0 %282
    %v284 = vsel %vm159, %v270, -inf
    %285 = vmax.xlane.f32.xlu0 %v284
    %v286 = vpop.xlane.xlu0 %285
    %v287 = vsel %vm159, %v271, -inf
    %288 = vmax.xlane.f32.xlu0 %v287
    %v289 = vpop.xlane.xlu0 %288
    %v290 = vsel %vm159, %v272, -inf
    %291 = vmax.xlane.f32.xlu0 %v290
    %v292 = vpop.xlane.xlu0 %291
    %v293 = vsel %vm159, %v273, -inf
    %294 = vmax.xlane.f32.xlu0 %v293
    %v295 = vpop.xlane.xlu0 %294
    %v296 = vsel %vm159, %v274, -inf
    %297 = vmax.xlane.f32.xlu0 %v296
    %v298 = vpop.xlane.xlu0 %297
    %vm299 = vcmask 7168
    %v300 = vsel %vm299, %v245, %v277
    %v301 = vsel %vm299, %v248, %v280
    %v302 = vsel %vm299, %v251, %v283
    %v303 = vsel %vm299, %v254, %v286
    %v304 = vsel %vm299, %v257, %v289
    %v305 = vsel %vm299, %v260, %v292
    %v306 = vsel %vm299, %v263, %v295
    %v307 = vsel %vm299, %v266, %v298
    %v308 = vld [vmem:[#allocation2] sm:$0xff]
    %v309 = vld [vmem:[#allocation2 + $0x8] sm:$0xff]
    %v310 = vld [vmem:[#allocation2 + $0x10] sm:$0xff]
    %v311 = vld [vmem:[#allocation2 + $0x18] sm:$0xff]
    %v312 = vld [vmem:[#allocation2 + $0x20] sm:$0xff]
    %v313 = vld [vmem:[#allocation2 + $0x28] sm:$0xff]
    %v314 = vld [vmem:[#allocation2 + $0x30] sm:$0xff]
    %v315 = vld [vmem:[#allocation2 + $0x38] sm:$0xff]
    %v316 = vlaneseq
    %v317 = vshrl.u32 %v316, 7
    %v318 = vsub.s32 1, %v317
    %v319 = vrot.slane %v221, %v318
    %v320 = vmul.f32 %v34, %v319
    %v321 = vmul.f32 %v35, %v319
    %v322 = vmul.f32 %v36, %v319
    %v323 = vmul.f32 %v37, %v319
    %v324 = vmul.f32 %v38, %v319
    %v325 = vmul.f32 %v39, %v319
    %v326 = vmul.f32 %v40, %v319
    %v327 = vmul.f32 %v41, %v319
    %v328 = vsel %vm154, %v320, -inf
    %v329 = vsel %vm154, %v321, -inf
    %v330 = vsel %vm154, %v322, -inf
    %v331 = vsel %vm154, %v323, -inf
    %v332 = vsel %vm154, %v324, -inf
    %v333 = vsel %vm154, %v325, -inf
    %v334 = vsel %vm154, %v326, -inf
    %v335 = vsel %vm154, %v327, -inf
    %v336 = vsel %vm159, %v328, -inf
    %337 = vmax.xlane.f32.xlu0 %v336
    %v338 = vpop.xlane.xlu0 %337
    %v339 = vsel %vm159, %v329, -inf
    %340 = vmax.xlane.f32.xlu0 %v339
    %v341 = vpop.xlane.xlu0 %340
    %v342 = vsel %vm159, %v330, -inf
    %343 = vmax.xlane.f32.xlu0 %v342
    %v344 = vpop.xlane.xlu0 %343
    %v345 = vsel %vm159, %v331, -inf
    %346 = vmax.xlane.f32.xlu0 %v345
    %v347 = vpop.xlane.xlu0 %346
    %v348 = vsel %vm159, %v332, -inf
    %349 = vmax.xlane.f32.xlu0 %v348
    %v350 = vpop.xlane.xlu0 %349
    %v351 = vsel %vm159, %v333, -inf
    %352 = vmax.xlane.f32.xlu0 %v351
    %v353 = vpop.xlane.xlu0 %352
    %v354 = vsel %vm159, %v334, -inf
    %355 = vmax.xlane.f32.xlu0 %v354
    %v356 = vpop.xlane.xlu0 %355
    %v357 = vsel %vm159, %v335, -inf
    %358 = vmax.xlane.f32.xlu0 %v357
    %v359 = vpop.xlane.xlu0 %358
    %v360 = vsel %vm154, -inf, %v320
    %v361 = vsel %vm154, -inf, %v321
    %v362 = vsel %vm154, -inf, %v322
    %v363 = vsel %vm154, -inf, %v323
    %v364 = vsel %vm154, -inf, %v324
    %v365 = vsel %vm154, -inf, %v325
    %v366 = vsel %vm154, -inf, %v326
    %v367 = vsel %vm154, -inf, %v327
    %v368 = vsel %vm159, %v360, -inf
    %369 = vmax.xlane.f32.xlu0 %v368
    %v370 = vpop.xlane.xlu0 %369
    %v371 = vsel %vm159, %v361, -inf
    %372 = vmax.xlane.f32.xlu0 %v371
    %v373 = vpop.xlane.xlu0 %372
    %v374 = vsel %vm159, %v362, -inf
    %375 = vmax.xlane.f32.xlu0 %v374
    %v376 = vpop.xlane.xlu0 %375
    %v377 = vsel %vm159, %v363, -inf
    %378 = vmax.xlane.f32.xlu0 %v377
    %v379 = vpop.xlane.xlu0 %378
    %v380 = vsel %vm159, %v364, -inf
    %381 = vmax.xlane.f32.xlu0 %v380
    %v382 = vpop.xlane.xlu0 %381
    %v383 = vsel %vm159, %v365, -inf
    %384 = vmax.xlane.f32.xlu0 %v383
    %v385 = vpop.xlane.xlu0 %384
    %v386 = vsel %vm159, %v366, -inf
    %387 = vmax.xlane.f32.xlu0 %v386
    %v388 = vpop.xlane.xlu0 %387
    %v389 = vsel %vm159, %v367, -inf
    %390 = vmax.xlane.f32.xlu0 %v389
    %v391 = vpop.xlane.xlu0 %390
    %v392 = vsel %vm299, %v338, %v370
    %v393 = vsel %vm299, %v341, %v373
    %v394 = vsel %vm299, %v344, %v376
    %v395 = vsel %vm299, %v347, %v379
    %v396 = vsel %vm299, %v350, %v382
    %v397 = vsel %vm299, %v353, %v385
    %v398 = vsel %vm299, %v356, %v388
    %v399 = vsel %vm299, %v359, %v391
    %s400 = scalar_lea.vmem [#allocation2], 64
    %v401 = vld [vmem:[%s400] sm:$0xff]
    %v402 = vld [vmem:[%s400 + $0x8] sm:$0xff]
    %v403 = vld [vmem:[%s400 + $0x10] sm:$0xff]
    %v404 = vld [vmem:[%s400 + $0x18] sm:$0xff]
    %v405 = vld [vmem:[%s400 + $0x20] sm:$0xff]
    %v406 = vld [vmem:[%s400 + $0x28] sm:$0xff]
    %v407 = vld [vmem:[%s400 + $0x30] sm:$0xff]
    %v408 = vld [vmem:[%s400 + $0x38] sm:$0xff]
    %v410 = vsel %vm56, %v401, 0
    %v413 = vsel %vm56, %v402, 0
    %v416 = vsel %vm56, %v403, 0
    %v419 = vsel %vm56, %v404, 0
    %v422 = vsel %vm56, %v405, 0
    %v425 = vsel %vm56, %v406, 0
    %v428 = vsel %vm56, %v407, 0
    %v431 = vsel %vm56, %v408, 0
    %433 = vmatprep.subr.mxu0 0.0
    %434 = vmatpush1.msra.mxu0 0.0
    %435 = vmatprep.subr.mxu0 0.0
    %436 = vmatpush1.msra.mxu0 0.0
    %437 = vmatprep.subr.mxu0 0.0
    %438 = vmatpush1.msra.mxu0 0.0
    %439 = vmatprep.subr.mxu0 0.0
    %440 = vmatpush1.msra.mxu0 0.0
    %441 = vmatprep.subr.mxu0 0.0
    %442 = vmatpush1.msra.mxu0 0.0
    %443 = vmatprep.subr.mxu0 0.0
    %444 = vmatpush1.msra.mxu0 0.0
    %445 = vmatprep.subr.mxu0 0.0
    %446 = vmatpush1.msra.mxu0 0.0
    %447 = vmatprep.subr.mxu0 0.0
    %448 = vmatpush1.msra.mxu0 0.0
    %449 = vmatprep.subr.mxu0 0.0
    %450 = vmatpush1.msra.mxu0 %v399
    %451 = vmatprep.subr.mxu0 0.0
    %452 = vmatpush1.msra.mxu0 %v398
    %453 = vmatprep.subr.mxu0 0.0
    %454 = vmatpush1.msra.mxu0 %v397
    %455 = vmatprep.subr.mxu0 0.0
    %456 = vmatpush1.msra.mxu0 %v396
    %457 = vmatprep.subr.mxu0 0.0
    %458 = vmatpush1.msra.mxu0 %v395
    %459 = vmatprep.subr.mxu0 0.0
    %460 = vmatpush1.msra.mxu0 %v394
    %461 = vmatprep.subr.mxu0 0.0
    %462 = vmatpush1.msra.mxu0 %v393
    %463 = vmatprep.subr.mxu0 0.0
    %464 = vmatpush1.msra.mxu0 %v392
    %465 = vmatprep.subr.mxu0 0.0
    %466 = vmatpush2.msra.mxu0 0.0
    %467 = vmatprep.subr.mxu0 0.0
    %468 = vmatpush2.msra.mxu0 0.0
    %469 = vmatprep.subr.mxu0 0.0
    %470 = vmatpush2.msra.mxu0 0.0
    %471 = vmatprep.subr.mxu0 0.0
    %472 = vmatpush2.msra.mxu0 0.0
    %473 = vmatprep.subr.mxu0 0.0
    %474 = vmatpush2.msra.mxu0 0.0
    %475 = vmatprep.subr.mxu0 0.0
    %476 = vmatpush2.msra.mxu0 0.0
    %477 = vmatprep.subr.mxu0 0.0
    %478 = vmatpush2.msra.mxu0 0.0
    %479 = vmatprep.subr.mxu0 0.0
    %480 = vmatpush2.msra.mxu0 0.0
    %481 = vmatprep.subr.mxu0 0.0
    %482 = vmatpush2.msra.mxu0 0.0
    %483 = vmatprep.subr.mxu0 0.0
    %484 = vmatpush2.msra.mxu0 0.0
    %485 = vmatprep.subr.mxu0 0.0
    %486 = vmatpush2.msra.mxu0 0.0
    %487 = vmatprep.subr.mxu0 0.0
    %488 = vmatpush2.msra.mxu0 0.0
    %489 = vmatprep.subr.mxu0 0.0
    %490 = vmatpush2.msra.mxu0 0.0
    %491 = vmatprep.subr.mxu0 0.0
    %492 = vmatpush2.msra.mxu0 0.0
    %493 = vmatprep.subr.mxu0 0.0
    %494 = vmatpush2.msra.mxu0 0.0
    %495 = vmatprep.subr.mxu0 0.0
    %496 = vmatpush2.msra.mxu0 0.0
    %497 = vmatprep.mubr.f32.mxu0 0.0
    %498 = vmatmul.mubr.f32.gmra.mxu0 %v410
    %v499 = vpop.f32.mrf.mxu0
    %v500 = vadd.f32 0.0, %v499
    %v501 = vpop.f32.mrf.mxu0
    %502 = vmatprep.mubr.f32.mxu0 0.0
    %503 = vmatmul.mubr.f32.gmra.mxu0 %v413
    %v504 = vpop.f32.mrf.mxu0
    %v505 = vadd.f32 0.0, %v504
    %v506 = vpop.f32.mrf.mxu0
    %507 = vmatprep.mubr.f32.mxu0 0.0
    %508 = vmatmul.mubr.f32.gmra.mxu0 %v416
    %v509 = vpop.f32.mrf.mxu0
    %v510 = vadd.f32 0.0, %v509
    %v511 = vpop.f32.mrf.mxu0
    %512 = vmatprep.mubr.f32.mxu0 0.0
    %513 = vmatmul.mubr.f32.gmra.mxu0 %v419
    %v514 = vpop.f32.mrf.mxu0
    %v515 = vadd.f32 0.0, %v514
    %v516 = vpop.f32.mrf.mxu0
    %517 = vmatprep.mubr.f32.mxu0 0.0
    %518 = vmatmul.mubr.f32.gmra.mxu0 %v422
    %v519 = vpop.f32.mrf.mxu0
    %v520 = vadd.f32 0.0, %v519
    %v521 = vpop.f32.mrf.mxu0
    %522 = vmatprep.mubr.f32.mxu0 0.0
    %523 = vmatmul.mubr.f32.gmra.mxu0 %v425
    %v524 = vpop.f32.mrf.mxu0
    %v525 = vadd.f32 0.0, %v524
    %v526 = vpop.f32.mrf.mxu0
    %527 = vmatprep.mubr.f32.mxu0 0.0
    %528 = vmatmul.mubr.f32.gmra.mxu0 %v428
    %v529 = vpop.f32.mrf.mxu0
    %v530 = vadd.f32 0.0, %v529
    %v531 = vpop.f32.mrf.mxu0
    %532 = vmatprep.mubr.f32.mxu0 0.0
    %533 = vmatmul.mubr.f32.gmra.mxu0 %v431
    %v534 = vpop.f32.mrf.mxu0
    %v535 = vadd.f32 0.0, %v534
    %v536 = vpop.f32.mrf.mxu0
    %537 = vdwg.mxu0
    %v539 = vsel %vm56, %v308, 0
    %v542 = vsel %vm56, %v309, 0
    %v545 = vsel %vm56, %v310, 0
    %v548 = vsel %vm56, %v311, 0
    %v551 = vsel %vm56, %v312, 0
    %v554 = vsel %vm56, %v313, 0
    %v557 = vsel %vm56, %v314, 0
    %v560 = vsel %vm56, %v315, 0
    %562 = vmatprep.subr.mxu0 0.0
    %563 = vmatpush1.msra.mxu0 0.0
    %564 = vmatprep.subr.mxu0 0.0
    %565 = vmatpush1.msra.mxu0 0.0
    %566 = vmatprep.subr.mxu0 0.0
    %567 = vmatpush1.msra.mxu0 0.0
    %568 = vmatprep.subr.mxu0 0.0
    %569 = vmatpush1.msra.mxu0 0.0
    %570 = vmatprep.subr.mxu0 0.0
    %571 = vmatpush1.msra.mxu0 0.0
    %572 = vmatprep.subr.mxu0 0.0
    %573 = vmatpush1.msra.mxu0 0.0
    %574 = vmatprep.subr.mxu0 0.0
    %575 = vmatpush1.msra.mxu0 0.0
    %576 = vmatprep.subr.mxu0 0.0
    %577 = vmatpush1.msra.mxu0 0.0
    %578 = vmatprep.subr.mxu0 0.0
    %579 = vmatpush1.msra.mxu0 %v307
    %580 = vmatprep.subr.mxu0 0.0
    %581 = vmatpush1.msra.mxu0 %v306
    %582 = vmatprep.subr.mxu0 0.0
    %583 = vmatpush1.msra.mxu0 %v305
    %584 = vmatprep.subr.mxu0 0.0
    %585 = vmatpush1.msra.mxu0 %v304
    %586 = vmatprep.subr.mxu0 0.0
    %587 = vmatpush1.msra.mxu0 %v303
    %588 = vmatprep.subr.mxu0 0.0
    %589 = vmatpush1.msra.mxu0 %v302
    %590 = vmatprep.subr.mxu0 0.0
    %591 = vmatpush1.msra.mxu0 %v301
    %592 = vmatprep.subr.mxu0 0.0
    %593 = vmatpush1.msra.mxu0 %v300
    %594 = vmatprep.subr.mxu0 0.0
    %595 = vmatpush2.msra.mxu0 0.0
    %596 = vmatprep.subr.mxu0 0.0
    %597 = vmatpush2.msra.mxu0 0.0
    %598 = vmatprep.subr.mxu0 0.0
    %599 = vmatpush2.msra.mxu0 0.0
    %600 = vmatprep.subr.mxu0 0.0
    %601 = vmatpush2.msra.mxu0 0.0
    %602 = vmatprep.subr.mxu0 0.0
    %603 = vmatpush2.msra.mxu0 0.0
    %604 = vmatprep.subr.mxu0 0.0
    %605 = vmatpush2.msra.mxu0 0.0
    %606 = vmatprep.subr.mxu0 0.0
    %607 = vmatpush2.msra.mxu0 0.0
    %608 = vmatprep.subr.mxu0 0.0
    %609 = vmatpush2.msra.mxu0 0.0
    %610 = vmatprep.subr.mxu0 0.0
    %611 = vmatpush2.msra.mxu0 0.0
    %612 = vmatprep.subr.mxu0 0.0
    %613 = vmatpush2.msra.mxu0 0.0
    %614 = vmatprep.subr.mxu0 0.0
    %615 = vmatpush2.msra.mxu0 0.0
    %616 = vmatprep.subr.mxu0 0.0
    %617 = vmatpush2.msra.mxu0 0.0
    %618 = vmatprep.subr.mxu0 0.0
    %619 = vmatpush2.msra.mxu0 0.0
    %620 = vmatprep.subr.mxu0 0.0
    %621 = vmatpush2.msra.mxu0 0.0
    %622 = vmatprep.subr.mxu0 0.0
    %623 = vmatpush2.msra.mxu0 0.0
    %624 = vmatprep.subr.mxu0 0.0
    %625 = vmatpush2.msra.mxu0 0.0
    %626 = vmatprep.mubr.f32.mxu0 0.0
    %627 = vmatmul.mubr.f32.gmra.mxu0 %v539
    %v628 = vpop.f32.mrf.mxu0
    %v629 = vadd.f32 %v500, %v628
    %v630 = vpop.f32.mrf.mxu0
    %631 = vmatprep.mubr.f32.mxu0 0.0
    %632 = vmatmul.mubr.f32.gmra.mxu0 %v542
    %v633 = vpop.f32.mrf.mxu0
    %v634 = vadd.f32 %v505, %v633
    %v635 = vpop.f32.mrf.mxu0
    %636 = vmatprep.mubr.f32.mxu0 0.0
    %637 = vmatmul.mubr.f32.gmra.mxu0 %v545
    %v638 = vpop.f32.mrf.mxu0
    %v639 = vadd.f32 %v510, %v638
    %v640 = vpop.f32.mrf.mxu0
    %641 = vmatprep.mubr.f32.mxu0 0.0
    %642 = vmatmul.mubr.f32.gmra.mxu0 %v548
    %v643 = vpop.f32.mrf.mxu0
    %v644 = vadd.f32 %v515, %v643
    %v645 = vpop.f32.mrf.mxu0
    %646 = vmatprep.mubr.f32.mxu0 0.0
    %647 = vmatmul.mubr.f32.gmra.mxu0 %v551
    %v648 = vpop.f32.mrf.mxu0
    %v649 = vadd.f32 %v520, %v648
    %v650 = vpop.f32.mrf.mxu0
    %651 = vmatprep.mubr.f32.mxu0 0.0
    %652 = vmatmul.mubr.f32.gmra.mxu0 %v554
    %v653 = vpop.f32.mrf.mxu0
    %v654 = vadd.f32 %v525, %v653
    %v655 = vpop.f32.mrf.mxu0
    %656 = vmatprep.mubr.f32.mxu0 0.0
    %657 = vmatmul.mubr.f32.gmra.mxu0 %v557
    %v658 = vpop.f32.mrf.mxu0
    %v659 = vadd.f32 %v530, %v658
    %v660 = vpop.f32.mrf.mxu0
    %661 = vmatprep.mubr.f32.mxu0 0.0
    %662 = vmatmul.mubr.f32.gmra.mxu0 %v560
    %v663 = vpop.f32.mrf.mxu0
    %v664 = vadd.f32 %v535, %v663
    %v665 = vpop.f32.mrf.mxu0
    %666 = vdwg.mxu0
    %v667 = vlaneseq
    %v668 = vshrl.u32 %v667, 7
    %v669 = vsub.s32 2, %v668
    %v670 = vrot.slane %v221, %v669
    %v671 = vmul.f32 %v34, %v670
    %v672 = vmul.f32 %v35, %v670
    %v673 = vmul.f32 %v36, %v670
    %v674 = vmul.f32 %v37, %v670
    %v675 = vmul.f32 %v38, %v670
    %v676 = vmul.f32 %v39, %v670
    %v677 = vmul.f32 %v40, %v670
    %v678 = vmul.f32 %v41, %v670
    %v679 = vsel %vm154, %v671, -inf
    %v680 = vsel %vm154, %v672, -inf
    %v681 = vsel %vm154, %v673, -inf
    %v682 = vsel %vm154, %v674, -inf
    %v683 = vsel %vm154, %v675, -inf
    %v684 = vsel %vm154, %v676, -inf
    %v685 = vsel %vm154, %v677, -inf
    %v686 = vsel %vm154, %v678, -inf
    %v687 = vsel %vm159, %v679, -inf
    %688 = vmax.xlane.f32.xlu0 %v687
    %v689 = vpop.xlane.xlu0 %688
    %v690 = vsel %vm159, %v680, -inf
    %691 = vmax.xlane.f32.xlu0 %v690
    %v692 = vpop.xlane.xlu0 %691
    %v693 = vsel %vm159, %v681, -inf
    %694 = vmax.xlane.f32.xlu0 %v693
    %v695 = vpop.xlane.xlu0 %694
    %v696 = vsel %vm159, %v682, -inf
    %697 = vmax.xlane.f32.xlu0 %v696
    %v698 = vpop.xlane.xlu0 %697
    %v699 = vsel %vm159, %v683, -inf
    %700 = vmax.xlane.f32.xlu0 %v699
    %v701 = vpop.xlane.xlu0 %700
    %v702 = vsel %vm159, %v684, -inf
    %703 = vmax.xlane.f32.xlu0 %v702
    %v704 = vpop.xlane.xlu0 %703
    %v705 = vsel %vm159, %v685, -inf
    %706 = vmax.xlane.f32.xlu0 %v705
    %v707 = vpop.xlane.xlu0 %706
    %v708 = vsel %vm159, %v686, -inf
    %709 = vmax.xlane.f32.xlu0 %v708
    %v710 = vpop.xlane.xlu0 %709
    %v711 = vsel %vm154, -inf, %v671
    %v712 = vsel %vm154, -inf, %v672
    %v713 = vsel %vm154, -inf, %v673
    %v714 = vsel %vm154, -inf, %v674
    %v715 = vsel %vm154, -inf, %v675
    %v716 = vsel %vm154, -inf, %v676
    %v717 = vsel %vm154, -inf, %v677
    %v718 = vsel %vm154, -inf, %v678
    %v719 = vsel %vm159, %v711, -inf
    %720 = vmax.xlane.f32.xlu0 %v719
    %v721 = vpop.xlane.xlu0 %720
    %v722 = vsel %vm159, %v712, -inf
    %723 = vmax.xlane.f32.xlu0 %v722
    %v724 = vpop.xlane.xlu0 %723
    %v725 = vsel %vm159, %v713, -inf
    %726 = vmax.xlane.f32.xlu0 %v725
    %v727 = vpop.xlane.xlu0 %726
    %v728 = vsel %vm159, %v714, -inf
    %729 = vmax.xlane.f32.xlu0 %v728
    %v730 = vpop.xlane.xlu0 %729
    %v731 = vsel %vm159, %v715, -inf
    %732 = vmax.xlane.f32.xlu0 %v731
    %v733 = vpop.xlane.xlu0 %732
    %v734 = vsel %vm159, %v716, -inf
    %735 = vmax.xlane.f32.xlu0 %v734
    %v736 = vpop.xlane.xlu0 %735
    %v737 = vsel %vm159, %v717, -inf
    %738 = vmax.xlane.f32.xlu0 %v737
    %v739 = vpop.xlane.xlu0 %738
    %v740 = vsel %vm159, %v718, -inf
    %741 = vmax.xlane.f32.xlu0 %v740
    %v742 = vpop.xlane.xlu0 %741
    %v743 = vsel %vm299, %v689, %v721
    %v744 = vsel %vm299, %v692, %v724
    %v745 = vsel %vm299, %v695, %v727
    %v746 = vsel %vm299, %v698, %v730
    %v747 = vsel %vm299, %v701, %v733
    %v748 = vsel %vm299, %v704, %v736
    %v749 = vsel %vm299, %v707, %v739
    %v750 = vsel %vm299, %v710, %v742
    %s751 = scalar_lea.vmem [#allocation2], 128
    %v752 = vld [vmem:[%s751] sm:$0xff]
    %v753 = vld [vmem:[%s751 + $0x8] sm:$0xff]
    %v754 = vld [vmem:[%s751 + $0x10] sm:$0xff]
    %v755 = vld [vmem:[%s751 + $0x18] sm:$0xff]
    %v756 = vld [vmem:[%s751 + $0x20] sm:$0xff]
    %v757 = vld [vmem:[%s751 + $0x28] sm:$0xff]
    %v758 = vld [vmem:[%s751 + $0x30] sm:$0xff]
    %v759 = vld [vmem:[%s751 + $0x38] sm:$0xff]
    %v761 = vsel %vm56, %v752, 0
    %v764 = vsel %vm56, %v753, 0
    %v767 = vsel %vm56, %v754, 0
    %v770 = vsel %vm56, %v755, 0
    %v773 = vsel %vm56, %v756, 0
    %v776 = vsel %vm56, %v757, 0
    %v779 = vsel %vm56, %v758, 0
    %v782 = vsel %vm56, %v759, 0
    %784 = vmatprep.subr.mxu0 0.0
    %785 = vmatpush1.msra.mxu0 0.0
    %786 = vmatprep.subr.mxu0 0.0
    %787 = vmatpush1.msra.mxu0 0.0
    %788 = vmatprep.subr.mxu0 0.0
    %789 = vmatpush1.msra.mxu0 0.0
    %790 = vmatprep.subr.mxu0 0.0
    %791 = vmatpush1.msra.mxu0 0.0
    %792 = vmatprep.subr.mxu0 0.0
    %793 = vmatpush1.msra.mxu0 0.0
    %794 = vmatprep.subr.mxu0 0.0
    %795 = vmatpush1.msra.mxu0 0.0
    %796 = vmatprep.subr.mxu0 0.0
    %797 = vmatpush1.msra.mxu0 0.0
    %798 = vmatprep.subr.mxu0 0.0
    %799 = vmatpush1.msra.mxu0 0.0
    %800 = vmatprep.subr.mxu0 0.0
    %801 = vmatpush1.msra.mxu0 %v750
    %802 = vmatprep.subr.mxu0 0.0
    %803 = vmatpush1.msra.mxu0 %v749
    %804 = vmatprep.subr.mxu0 0.0
    %805 = vmatpush1.msra.mxu0 %v748
    %806 = vmatprep.subr.mxu0 0.0
    %807 = vmatpush1.msra.mxu0 %v747
    %808 = vmatprep.subr.mxu0 0.0
    %809 = vmatpush1.msra.mxu0 %v746
    %810 = vmatprep.subr.mxu0 0.0
    %811 = vmatpush1.msra.mxu0 %v745
    %812 = vmatprep.subr.mxu0 0.0
    %813 = vmatpush1.msra.mxu0 %v744
    %814 = vmatprep.subr.mxu0 0.0
    %815 = vmatpush1.msra.mxu0 %v743
    %816 = vmatprep.subr.mxu0 0.0
    %817 = vmatpush2.msra.mxu0 0.0
    %818 = vmatprep.subr.mxu0 0.0
    %819 = vmatpush2.msra.mxu0 0.0
    %820 = vmatprep.subr.mxu0 0.0
    %821 = vmatpush2.msra.mxu0 0.0
    %822 = vmatprep.subr.mxu0 0.0
    %823 = vmatpush2.msra.mxu0 0.0
    %824 = vmatprep.subr.mxu0 0.0
    %825 = vmatpush2.msra.mxu0 0.0
    %826 = vmatprep.subr.mxu0 0.0
    %827 = vmatpush2.msra.mxu0 0.0
    %828 = vmatprep.subr.mxu0 0.0
    %829 = vmatpush2.msra.mxu0 0.0
    %830 = vmatprep.subr.mxu0 0.0
    %831 = vmatpush2.msra.mxu0 0.0
    %832 = vmatprep.subr.mxu0 0.0
    %833 = vmatpush2.msra.mxu0 0.0
    %834 = vmatprep.subr.mxu0 0.0
    %835 = vmatpush2.msra.mxu0 0.0
    %836 = vmatprep.subr.mxu0 0.0
    %837 = vmatpush2.msra.mxu0 0.0
    %838 = vmatprep.subr.mxu0 0.0
    %839 = vmatpush2.msra.mxu0 0.0
    %840 = vmatprep.subr.mxu0 0.0
    %841 = vmatpush2.msra.mxu0 0.0
    %842 = vmatprep.subr.mxu0 0.0
    %843 = vmatpush2.msra.mxu0 0.0
    %844 = vmatprep.subr.mxu0 0.0
    %845 = vmatpush2.msra.mxu0 0.0
    %846 = vmatprep.subr.mxu0 0.0
    %847 = vmatpush2.msra.mxu0 0.0
    %848 = vmatprep.mubr.f32.mxu0 0.0
    %849 = vmatmul.mubr.f32.gmra.mxu0 %v761
    %v850 = vpop.f32.mrf.mxu0
    %v851 = vadd.f32 0.0, %v850
    %v852 = vpop.f32.mrf.mxu0
    %853 = vmatprep.mubr.f32.mxu0 0.0
    %854 = vmatmul.mubr.f32.gmra.mxu0 %v764
    %v855 = vpop.f32.mrf.mxu0
    %v856 = vadd.f32 0.0, %v855
    %v857 = vpop.f32.mrf.mxu0
    %858 = vmatprep.mubr.f32.mxu0 0.0
    %859 = vmatmul.mubr.f32.gmra.mxu0 %v767
    %v860 = vpop.f32.mrf.mxu0
    %v861 = vadd.f32 0.0, %v860
    %v862 = vpop.f32.mrf.mxu0
    %863 = vmatprep.mubr.f32.mxu0 0.0
    %864 = vmatmul.mubr.f32.gmra.mxu0 %v770
    %v865 = vpop.f32.mrf.mxu0
    %v866 = vadd.f32 0.0, %v865
    %v867 = vpop.f32.mrf.mxu0
    %868 = vmatprep.mubr.f32.mxu0 0.0
    %869 = vmatmul.mubr.f32.gmra.mxu0 %v773
    %v870 = vpop.f32.mrf.mxu0
    %v871 = vadd.f32 0.0, %v870
    %v872 = vpop.f32.mrf.mxu0
    %873 = vmatprep.mubr.f32.mxu0 0.0
    %874 = vmatmul.mubr.f32.gmra.mxu0 %v776
    %v875 = vpop.f32.mrf.mxu0
    %v876 = vadd.f32 0.0, %v875
    %v877 = vpop.f32.mrf.mxu0
    %878 = vmatprep.mubr.f32.mxu0 0.0
    %879 = vmatmul.mubr.f32.gmra.mxu0 %v779
    %v880 = vpop.f32.mrf.mxu0
    %v881 = vadd.f32 0.0, %v880
    %v882 = vpop.f32.mrf.mxu0
    %883 = vmatprep.mubr.f32.mxu0 0.0
    %884 = vmatmul.mubr.f32.gmra.mxu0 %v782
    %v885 = vpop.f32.mrf.mxu0
    %v886 = vadd.f32 0.0, %v885
    %v887 = vpop.f32.mrf.mxu0
    %888 = vdwg.mxu0
    %v889 = vadd.f32 %v629, %v851
    %v890 = vadd.f32 %v634, %v856
    %v891 = vadd.f32 %v639, %v861
    %v892 = vadd.f32 %v644, %v866
    %v893 = vadd.f32 %v649, %v871
    %v894 = vadd.f32 %v654, %v876
    %v895 = vadd.f32 %v659, %v881
    %v896 = vadd.f32 %v664, %v886
    %v897 = vlaneseq
    %v898 = vshrl.u32 %v897, 7
    %v899 = vsub.s32 3, %v898
    %v900 = vrot.slane %v221, %v899
    %v901 = vmul.f32 %v34, %v900
    %v902 = vmul.f32 %v35, %v900
    %v903 = vmul.f32 %v36, %v900
    %v904 = vmul.f32 %v37, %v900
    %v905 = vmul.f32 %v38, %v900
    %v906 = vmul.f32 %v39, %v900
    %v907 = vmul.f32 %v40, %v900
    %v908 = vmul.f32 %v41, %v900
    %v909 = vsel %vm154, %v901, -inf
    %v910 = vsel %vm154, %v902, -inf
    %v911 = vsel %vm154, %v903, -inf
    %v912 = vsel %vm154, %v904, -inf
    %v913 = vsel %vm154, %v905, -inf
    %v914 = vsel %vm154, %v906, -inf
    %v915 = vsel %vm154, %v907, -inf
    %v916 = vsel %vm154, %v908, -inf
    %v917 = vsel %vm159, %v909, -inf
    %918 = vmax.xlane.f32.xlu0 %v917
    %v919 = vpop.xlane.xlu0 %918
    %v920 = vsel %vm159, %v910, -inf
    %921 = vmax.xlane.f32.xlu0 %v920
    %v922 = vpop.xlane.xlu0 %921
    %v923 = vsel %vm159, %v911, -inf
    %924 = vmax.xlane.f32.xlu0 %v923
    %v925 = vpop.xlane.xlu0 %924
    %v926 = vsel %vm159, %v912, -inf
    %927 = vmax.xlane.f32.xlu0 %v926
    %v928 = vpop.xlane.xlu0 %927
    %v929 = vsel %vm159, %v913, -inf
    %930 = vmax.xlane.f32.xlu0 %v929
    %v931 = vpop.xlane.xlu0 %930
    %v932 = vsel %vm159, %v914, -inf
    %933 = vmax.xlane.f32.xlu0 %v932
    %v934 = vpop.xlane.xlu0 %933
    %v935 = vsel %vm159, %v915, -inf
    %936 = vmax.xlane.f32.xlu0 %v935
    %v937 = vpop.xlane.xlu0 %936
    %v938 = vsel %vm159, %v916, -inf
    %939 = vmax.xlane.f32.xlu0 %v938
    %v940 = vpop.xlane.xlu0 %939
    %v941 = vsel %vm154, -inf, %v901
    %v942 = vsel %vm154, -inf, %v902
    %v943 = vsel %vm154, -inf, %v903
    %v944 = vsel %vm154, -inf, %v904
    %v945 = vsel %vm154, -inf, %v905
    %v946 = vsel %vm154, -inf, %v906
    %v947 = vsel %vm154, -inf, %v907
    %v948 = vsel %vm154, -inf, %v908
    %v949 = vsel %vm159, %v941, -inf
    %950 = vmax.xlane.f32.xlu0 %v949
    %v951 = vpop.xlane.xlu0 %950
    %v952 = vsel %vm159, %v942, -inf
    %953 = vmax.xlane.f32.xlu0 %v952
    %v954 = vpop.xlane.xlu0 %953
    %v955 = vsel %vm159, %v943, -inf
    %956 = vmax.xlane.f32.xlu0 %v955
    %v957 = vpop.xlane.xlu0 %956
    %v958 = vsel %vm159, %v944, -inf
    %959 = vmax.xlane.f32.xlu0 %v958
    %v960 = vpop.xlane.xlu0 %959
    %v961 = vsel %vm159, %v945, -inf
    %962 = vmax.xlane.f32.xlu0 %v961
    %v963 = vpop.xlane.xlu0 %962
    %v964 = vsel %vm159, %v946, -inf
    %965 = vmax.xlane.f32.xlu0 %v964
    %v966 = vpop.xlane.xlu0 %965
    %v967 = vsel %vm159, %v947, -inf
    %968 = vmax.xlane.f32.xlu0 %v967
    %v969 = vpop.xlane.xlu0 %968
    %v970 = vsel %vm159, %v948, -inf
    %971 = vmax.xlane.f32.xlu0 %v970
    %v972 = vpop.xlane.xlu0 %971
    %v973 = vsel %vm299, %v919, %v951
    %v974 = vsel %vm299, %v922, %v954
    %v975 = vsel %vm299, %v925, %v957
    %v976 = vsel %vm299, %v928, %v960
    %v977 = vsel %vm299, %v931, %v963
    %v978 = vsel %vm299, %v934, %v966
    %v979 = vsel %vm299, %v937, %v969
    %v980 = vsel %vm299, %v940, %v972
    %s981 = scalar_lea.vmem [#allocation2], 192
    %v982 = vld [vmem:[%s981] sm:$0xff]
    %v983 = vld [vmem:[%s981 + $0x8] sm:$0xff]
    %v984 = vld [vmem:[%s981 + $0x10] sm:$0xff]
    %v985 = vld [vmem:[%s981 + $0x18] sm:$0xff]
    %v986 = vld [vmem:[%s981 + $0x20] sm:$0xff]
    %v987 = vld [vmem:[%s981 + $0x28] sm:$0xff]
    %v988 = vld [vmem:[%s981 + $0x30] sm:$0xff]
    %v989 = vld [vmem:[%s981 + $0x38] sm:$0xff]
    %v991 = vsel %vm56, %v982, 0
    %v994 = vsel %vm56, %v983, 0
    %v997 = vsel %vm56, %v984, 0
    %v1000 = vsel %vm56, %v985, 0
    %v1003 = vsel %vm56, %v986, 0
    %v1006 = vsel %vm56, %v987, 0
    %v1009 = vsel %vm56, %v988, 0
    %v1012 = vsel %vm56, %v989, 0
    %1014 = vmatprep.subr.mxu0 0.0
    %1015 = vmatpush1.msra.mxu0 0.0
    %1016 = vmatprep.subr.mxu0 0.0
    %1017 = vmatpush1.msra.mxu0 0.0
    %1018 = vmatprep.subr.mxu0 0.0
    %1019 = vmatpush1.msra.mxu0 0.0
    %1020 = vmatprep.subr.mxu0 0.0
    %1021 = vmatpush1.msra.mxu0 0.0
    %1022 = vmatprep.subr.mxu0 0.0
    %1023 = vmatpush1.msra.mxu0 0.0
    %1024 = vmatprep.subr.mxu0 0.0
    %1025 = vmatpush1.msra.mxu0 0.0
    %1026 = vmatprep.subr.mxu0 0.0
    %1027 = vmatpush1.msra.mxu0 0.0
    %1028 = vmatprep.subr.mxu0 0.0
    %1029 = vmatpush1.msra.mxu0 0.0
    %1030 = vmatprep.subr.mxu0 0.0
    %1031 = vmatpush1.msra.mxu0 %v980
    %1032 = vmatprep.subr.mxu0 0.0
    %1033 = vmatpush1.msra.mxu0 %v979
    %1034 = vmatprep.subr.mxu0 0.0
    %1035 = vmatpush1.msra.mxu0 %v978
    %1036 = vmatprep.subr.mxu0 0.0
    %1037 = vmatpush1.msra.mxu0 %v977
    %1038 = vmatprep.subr.mxu0 0.0
    %1039 = vmatpush1.msra.mxu0 %v976
    %1040 = vmatprep.subr.mxu0 0.0
    %1041 = vmatpush1.msra.mxu0 %v975
    %1042 = vmatprep.subr.mxu0 0.0
    %1043 = vmatpush1.msra.mxu0 %v974
    %1044 = vmatprep.subr.mxu0 0.0
    %1045 = vmatpush1.msra.mxu0 %v973
    %1046 = vmatprep.subr.mxu0 0.0
    %1047 = vmatpush2.msra.mxu0 0.0
    %1048 = vmatprep.subr.mxu0 0.0
    %1049 = vmatpush2.msra.mxu0 0.0
    %1050 = vmatprep.subr.mxu0 0.0
    %1051 = vmatpush2.msra.mxu0 0.0
    %1052 = vmatprep.subr.mxu0 0.0
    %1053 = vmatpush2.msra.mxu0 0.0
    %1054 = vmatprep.subr.mxu0 0.0
    %1055 = vmatpush2.msra.mxu0 0.0
    %1056 = vmatprep.subr.mxu0 0.0
    %1057 = vmatpush2.msra.mxu0 0.0
    %1058 = vmatprep.subr.mxu0 0.0
    %1059 = vmatpush2.msra.mxu0 0.0
    %1060 = vmatprep.subr.mxu0 0.0
    %1061 = vmatpush2.msra.mxu0 0.0
    %1062 = vmatprep.subr.mxu0 0.0
    %1063 = vmatpush2.msra.mxu0 0.0
    %1064 = vmatprep.subr.mxu0 0.0
    %1065 = vmatpush2.msra.mxu0 0.0
    %1066 = vmatprep.subr.mxu0 0.0
    %1067 = vmatpush2.msra.mxu0 0.0
    %1068 = vmatprep.subr.mxu0 0.0
    %1069 = vmatpush2.msra.mxu0 0.0
    %1070 = vmatprep.subr.mxu0 0.0
    %1071 = vmatpush2.msra.mxu0 0.0
    %1072 = vmatprep.subr.mxu0 0.0
    %1073 = vmatpush2.msra.mxu0 0.0
    %1074 = vmatprep.subr.mxu0 0.0
    %1075 = vmatpush2.msra.mxu0 0.0
    %1076 = vmatprep.subr.mxu0 0.0
    %1077 = vmatpush2.msra.mxu0 0.0
    %1078 = vmatprep.mubr.f32.mxu0 0.0
    %1079 = vmatmul.mubr.f32.gmra.mxu0 %v991
    %v1080 = vpop.f32.mrf.mxu0
    %v1081 = vadd.f32 0.0, %v1080
    %v1082 = vpop.f32.mrf.mxu0
    %1083 = vmatprep.mubr.f32.mxu0 0.0
    %1084 = vmatmul.mubr.f32.gmra.mxu0 %v994
    %v1085 = vpop.f32.mrf.mxu0
    %v1086 = vadd.f32 0.0, %v1085
    %v1087 = vpop.f32.mrf.mxu0
    %1088 = vmatprep.mubr.f32.mxu0 0.0
    %1089 = vmatmul.mubr.f32.gmra.mxu0 %v997
    %v1090 = vpop.f32.mrf.mxu0
    %v1091 = vadd.f32 0.0, %v1090
    %v1092 = vpop.f32.mrf.mxu0
    %1093 = vmatprep.mubr.f32.mxu0 0.0
    %1094 = vmatmul.mubr.f32.gmra.mxu0 %v1000
    %v1095 = vpop.f32.mrf.mxu0
    %v1096 = vadd.f32 0.0, %v1095
    %v1097 = vpop.f32.mrf.mxu0
    %1098 = vmatprep.mubr.f32.mxu0 0.0
    %1099 = vmatmul.mubr.f32.gmra.mxu0 %v1003
    %v1100 = vpop.f32.mrf.mxu0
    %v1101 = vadd.f32 0.0, %v1100
    %v1102 = vpop.f32.mrf.mxu0
    %1103 = vmatprep.mubr.f32.mxu0 0.0
    %1104 = vmatmul.mubr.f32.gmra.mxu0 %v1006
    %v1105 = vpop.f32.mrf.mxu0
    %v1106 = vadd.f32 0.0, %v1105
    %v1107 = vpop.f32.mrf.mxu0
    %1108 = vmatprep.mubr.f32.mxu0 0.0
    %1109 = vmatmul.mubr.f32.gmra.mxu0 %v1009
    %v1110 = vpop.f32.mrf.mxu0
    %v1111 = vadd.f32 0.0, %v1110
    %v1112 = vpop.f32.mrf.mxu0
    %1113 = vmatprep.mubr.f32.mxu0 0.0
    %1114 = vmatmul.mubr.f32.gmra.mxu0 %v1012
    %v1115 = vpop.f32.mrf.mxu0
    %v1116 = vadd.f32 0.0, %v1115
    %v1117 = vpop.f32.mrf.mxu0
    %1118 = vdwg.mxu0
    %v1119 = vadd.f32 %v889, %v1081
    %v1120 = vadd.f32 %v890, %v1086
    %v1121 = vadd.f32 %v891, %v1091
    %v1122 = vadd.f32 %v892, %v1096
    %v1123 = vadd.f32 %v893, %v1101
    %v1124 = vadd.f32 %v894, %v1106
    %v1125 = vadd.f32 %v895, %v1111
    %v1126 = vadd.f32 %v896, %v1116
    %v1127 = vlaneseq
    %v1128 = vshrl.u32 %v1127, 7
    %v1129 = vsub.s32 4, %v1128
    %v1130 = vrot.slane %v221, %v1129
    %v1131 = vmul.f32 %v34, %v1130
    %v1132 = vmul.f32 %v35, %v1130
    %v1133 = vmul.f32 %v36, %v1130
    %v1134 = vmul.f32 %v37, %v1130
    %v1135 = vmul.f32 %v38, %v1130
    %v1136 = vmul.f32 %v39, %v1130
    %v1137 = vmul.f32 %v40, %v1130
    %v1138 = vmul.f32 %v41, %v1130
    %v1139 = vsel %vm154, %v1131, -inf
    %v1140 = vsel %vm154, %v1132, -inf
    %v1141 = vsel %vm154, %v1133, -inf
    %v1142 = vsel %vm154, %v1134, -inf
    %v1143 = vsel %vm154, %v1135, -inf
    %v1144 = vsel %vm154, %v1136, -inf
    %v1145 = vsel %vm154, %v1137, -inf
    %v1146 = vsel %vm154, %v1138, -inf
    %v1147 = vsel %vm159, %v1139, -inf
    %1148 = vmax.xlane.f32.xlu0 %v1147
    %v1149 = vpop.xlane.xlu0 %1148
    %v1150 = vsel %vm159, %v1140, -inf
    %1151 = vmax.xlane.f32.xlu0 %v1150
    %v1152 = vpop.xlane.xlu0 %1151
    %v1153 = vsel %vm159, %v1141, -inf
    %1154 = vmax.xlane.f32.xlu0 %v1153
    %v1155 = vpop.xlane.xlu0 %1154
    %v1156 = vsel %vm159, %v1142, -inf
    %1157 = vmax.xlane.f32.xlu0 %v1156
    %v1158 = vpop.xlane.xlu0 %1157
    %v1159 = vsel %vm159, %v1143, -inf
    %1160 = vmax.xlane.f32.xlu0 %v1159
    %v1161 = vpop.xlane.xlu0 %1160
    %v1162 = vsel %vm159, %v1144, -inf
    %1163 = vmax.xlane.f32.xlu0 %v1162
    %v1164 = vpop.xlane.xlu0 %1163
    %v1165 = vsel %vm159, %v1145, -inf
    %1166 = vmax.xlane.f32.xlu0 %v1165
    %v1167 = vpop.xlane.xlu0 %1166
    %v1168 = vsel %vm159, %v1146, -inf
    %1169 = vmax.xlane.f32.xlu0 %v1168
    %v1170 = vpop.xlane.xlu0 %1169
    %v1171 = vsel %vm154, -inf, %v1131
    %v1172 = vsel %vm154, -inf, %v1132
    %v1173 = vsel %vm154, -inf, %v1133
    %v1174 = vsel %vm154, -inf, %v1134
    %v1175 = vsel %vm154, -inf, %v1135
    %v1176 = vsel %vm154, -inf, %v1136
    %v1177 = vsel %vm154, -inf, %v1137
    %v1178 = vsel %vm154, -inf, %v1138
    %v1179 = vsel %vm159, %v1171, -inf
    %1180 = vmax.xlane.f32.xlu0 %v1179
    %v1181 = vpop.xlane.xlu0 %1180
    %v1182 = vsel %vm159, %v1172, -inf
    %1183 = vmax.xlane.f32.xlu0 %v1182
    %v1184 = vpop.xlane.xlu0 %1183
    %v1185 = vsel %vm159, %v1173, -inf
    %1186 = vmax.xlane.f32.xlu0 %v1185
    %v1187 = vpop.xlane.xlu0 %1186
    %v1188 = vsel %vm159, %v1174, -inf
    %1189 = vmax.xlane.f32.xlu0 %v1188
    %v1190 = vpop.xlane.xlu0 %1189
    %v1191 = vsel %vm159, %v1175, -inf
    %1192 = vmax.xlane.f32.xlu0 %v1191
    %v1193 = vpop.xlane.xlu0 %1192
    %v1194 = vsel %vm159, %v1176, -inf
    %1195 = vmax.xlane.f32.xlu0 %v1194
    %v1196 = vpop.xlane.xlu0 %1195
    %v1197 = vsel %vm159, %v1177, -inf
    %1198 = vmax.xlane.f32.xlu0 %v1197
    %v1199 = vpop.xlane.xlu0 %1198
    %v1200 = vsel %vm159, %v1178, -inf
    %1201 = vmax.xlane.f32.xlu0 %v1200
    %v1202 = vpop.xlane.xlu0 %1201
    %v1203 = vsel %vm299, %v1149, %v1181
    %v1204 = vsel %vm299, %v1152, %v1184
    %v1205 = vsel %vm299, %v1155, %v1187
    %v1206 = vsel %vm299, %v1158, %v1190
    %v1207 = vsel %vm299, %v1161, %v1193
    %v1208 = vsel %vm299, %v1164, %v1196
    %v1209 = vsel %vm299, %v1167, %v1199
    %v1210 = vsel %vm299, %v1170, %v1202
    %s1211 = scalar_lea.vmem [#allocation2], 256
    %v1212 = vld [vmem:[%s1211] sm:$0xff]
    %v1213 = vld [vmem:[%s1211 + $0x8] sm:$0xff]
    %v1214 = vld [vmem:[%s1211 + $0x10] sm:$0xff]
    %v1215 = vld [vmem:[%s1211 + $0x18] sm:$0xff]
    %v1216 = vld [vmem:[%s1211 + $0x20] sm:$0xff]
    %v1217 = vld [vmem:[%s1211 + $0x28] sm:$0xff]
    %v1218 = vld [vmem:[%s1211 + $0x30] sm:$0xff]
    %v1219 = vld [vmem:[%s1211 + $0x38] sm:$0xff]
    %v1221 = vsel %vm56, %v1212, 0
    %v1224 = vsel %vm56, %v1213, 0
    %v1227 = vsel %vm56, %v1214, 0
    %v1230 = vsel %vm56, %v1215, 0
    %v1233 = vsel %vm56, %v1216, 0
    %v1236 = vsel %vm56, %v1217, 0
    %v1239 = vsel %vm56, %v1218, 0
    %v1242 = vsel %vm56, %v1219, 0
    %1244 = vmatprep.subr.mxu0 0.0
    %1245 = vmatpush1.msra.mxu0 0.0
    %1246 = vmatprep.subr.mxu0 0.0
    %1247 = vmatpush1.msra.mxu0 0.0
    %1248 = vmatprep.subr.mxu0 0.0
    %1249 = vmatpush1.msra.mxu0 0.0
    %1250 = vmatprep.subr.mxu0 0.0
    %1251 = vmatpush1.msra.mxu0 0.0
    %1252 = vmatprep.subr.mxu0 0.0
    %1253 = vmatpush1.msra.mxu0 0.0
    %1254 = vmatprep.subr.mxu0 0.0
    %1255 = vmatpush1.msra.mxu0 0.0
    %1256 = vmatprep.subr.mxu0 0.0
    %1257 = vmatpush1.msra.mxu0 0.0
    %1258 = vmatprep.subr.mxu0 0.0
    %1259 = vmatpush1.msra.mxu0 0.0
    %1260 = vmatprep.subr.mxu0 0.0
    %1261 = vmatpush1.msra.mxu0 %v1210
    %1262 = vmatprep.subr.mxu0 0.0
    %1263 = vmatpush1.msra.mxu0 %v1209
    %1264 = vmatprep.subr.mxu0 0.0
    %1265 = vmatpush1.msra.mxu0 %v1208
    %1266 = vmatprep.subr.mxu0 0.0
    %1267 = vmatpush1.msra.mxu0 %v1207
    %1268 = vmatprep.subr.mxu0 0.0
    %1269 = vmatpush1.msra.mxu0 %v1206
    %1270 = vmatprep.subr.mxu0 0.0
    %1271 = vmatpush1.msra.mxu0 %v1205
    %1272 = vmatprep.subr.mxu0 0.0
    %1273 = vmatpush1.msra.mxu0 %v1204
    %1274 = vmatprep.subr.mxu0 0.0
    %1275 = vmatpush1.msra.mxu0 %v1203
    %1276 = vmatprep.subr.mxu0 0.0
    %1277 = vmatpush2.msra.mxu0 0.0
    %1278 = vmatprep.subr.mxu0 0.0
    %1279 = vmatpush2.msra.mxu0 0.0
    %1280 = vmatprep.subr.mxu0 0.0
    %1281 = vmatpush2.msra.mxu0 0.0
    %1282 = vmatprep.subr.mxu0 0.0
    %1283 = vmatpush2.msra.mxu0 0.0
    %1284 = vmatprep.subr.mxu0 0.0
    %1285 = vmatpush2.msra.mxu0 0.0
    %1286 = vmatprep.subr.mxu0 0.0
    %1287 = vmatpush2.msra.mxu0 0.0
    %1288 = vmatprep.subr.mxu0 0.0
    %1289 = vmatpush2.msra.mxu0 0.0
    %1290 = vmatprep.subr.mxu0 0.0
    %1291 = vmatpush2.msra.mxu0 0.0
    %1292 = vmatprep.subr.mxu0 0.0
    %1293 = vmatpush2.msra.mxu0 0.0
    %1294 = vmatprep.subr.mxu0 0.0
    %1295 = vmatpush2.msra.mxu0 0.0
    %1296 = vmatprep.subr.mxu0 0.0
    %1297 = vmatpush2.msra.mxu0 0.0
    %1298 = vmatprep.subr.mxu0 0.0
    %1299 = vmatpush2.msra.mxu0 0.0
    %1300 = vmatprep.subr.mxu0 0.0
    %1301 = vmatpush2.msra.mxu0 0.0
    %1302 = vmatprep.subr.mxu0 0.0
    %1303 = vmatpush2.msra.mxu0 0.0
    %1304 = vmatprep.subr.mxu0 0.0
    %1305 = vmatpush2.msra.mxu0 0.0
    %1306 = vmatprep.subr.mxu0 0.0
    %1307 = vmatpush2.msra.mxu0 0.0
    %1308 = vmatprep.mubr.f32.mxu0 0.0
    %1309 = vmatmul.mubr.f32.gmra.mxu0 %v1221
    %v1310 = vpop.f32.mrf.mxu0
    %v1311 = vadd.f32 0.0, %v1310
    %v1312 = vpop.f32.mrf.mxu0
    %1313 = vmatprep.mubr.f32.mxu0 0.0
    %1314 = vmatmul.mubr.f32.gmra.mxu0 %v1224
    %v1315 = vpop.f32.mrf.mxu0
    %v1316 = vadd.f32 0.0, %v1315
    %v1317 = vpop.f32.mrf.mxu0
    %1318 = vmatprep.mubr.f32.mxu0 0.0
    %1319 = vmatmul.mubr.f32.gmra.mxu0 %v1227
    %v1320 = vpop.f32.mrf.mxu0
    %v1321 = vadd.f32 0.0, %v1320
    %v1322 = vpop.f32.mrf.mxu0
    %1323 = vmatprep.mubr.f32.mxu0 0.0
    %1324 = vmatmul.mubr.f32.gmra.mxu0 %v1230
    %v1325 = vpop.f32.mrf.mxu0
    %v1326 = vadd.f32 0.0, %v1325
    %v1327 = vpop.f32.mrf.mxu0
    %1328 = vmatprep.mubr.f32.mxu0 0.0
    %1329 = vmatmul.mubr.f32.gmra.mxu0 %v1233
    %v1330 = vpop.f32.mrf.mxu0
    %v1331 = vadd.f32 0.0, %v1330
    %v1332 = vpop.f32.mrf.mxu0
    %1333 = vmatprep.mubr.f32.mxu0 0.0
    %1334 = vmatmul.mubr.f32.gmra.mxu0 %v1236
    %v1335 = vpop.f32.mrf.mxu0
    %v1336 = vadd.f32 0.0, %v1335
    %v1337 = vpop.f32.mrf.mxu0
    %1338 = vmatprep.mubr.f32.mxu0 0.0
    %1339 = vmatmul.mubr.f32.gmra.mxu0 %v1239
    %v1340 = vpop.f32.mrf.mxu0
    %v1341 = vadd.f32 0.0, %v1340
    %v1342 = vpop.f32.mrf.mxu0
    %1343 = vmatprep.mubr.f32.mxu0 0.0
    %1344 = vmatmul.mubr.f32.gmra.mxu0 %v1242
    %v1345 = vpop.f32.mrf.mxu0
    %v1346 = vadd.f32 0.0, %v1345
    %v1347 = vpop.f32.mrf.mxu0
    %1348 = vdwg.mxu0
    %v1349 = vadd.f32 %v1119, %v1311
    %v1350 = vadd.f32 %v1120, %v1316
    %v1351 = vadd.f32 %v1121, %v1321
    %v1352 = vadd.f32 %v1122, %v1326
    %v1353 = vadd.f32 %v1123, %v1331
    %v1354 = vadd.f32 %v1124, %v1336
    %v1355 = vadd.f32 %v1125, %v1341
    %v1356 = vadd.f32 %v1126, %v1346
    %v1357 = vlaneseq
    %v1358 = vshrl.u32 %v1357, 7
    %v1359 = vsub.s32 5, %v1358
    %v1360 = vrot.slane %v221, %v1359
    %v1361 = vmul.f32 %v34, %v1360
    %v1362 = vmul.f32 %v35, %v1360
    %v1363 = vmul.f32 %v36, %v1360
    %v1364 = vmul.f32 %v37, %v1360
    %v1365 = vmul.f32 %v38, %v1360
    %v1366 = vmul.f32 %v39, %v1360
    %v1367 = vmul.f32 %v40, %v1360
    %v1368 = vmul.f32 %v41, %v1360
    %v1369 = vsel %vm154, %v1361, -inf
    %v1370 = vsel %vm154, %v1362, -inf
    %v1371 = vsel %vm154, %v1363, -inf
    %v1372 = vsel %vm154, %v1364, -inf
    %v1373 = vsel %vm154, %v1365, -inf
    %v1374 = vsel %vm154, %v1366, -inf
    %v1375 = vsel %vm154, %v1367, -inf
    %v1376 = vsel %vm154, %v1368, -inf
    %v1377 = vsel %vm159, %v1369, -inf
    %1378 = vmax.xlane.f32.xlu0 %v1377
    %v1379 = vpop.xlane.xlu0 %1378
    %v1380 = vsel %vm159, %v1370, -inf
    %1381 = vmax.xlane.f32.xlu0 %v1380
    %v1382 = vpop.xlane.xlu0 %1381
    %v1383 = vsel %vm159, %v1371, -inf
    %1384 = vmax.xlane.f32.xlu0 %v1383
    %v1385 = vpop.xlane.xlu0 %1384
    %v1386 = vsel %vm159, %v1372, -inf
    %1387 = vmax.xlane.f32.xlu0 %v1386
    %v1388 = vpop.xlane.xlu0 %1387
    %v1389 = vsel %vm159, %v1373, -inf
    %1390 = vmax.xlane.f32.xlu0 %v1389
    %v1391 = vpop.xlane.xlu0 %1390
    %v1392 = vsel %vm159, %v1374, -inf
    %1393 = vmax.xlane.f32.xlu0 %v1392
    %v1394 = vpop.xlane.xlu0 %1393
    %v1395 = vsel %vm159, %v1375, -inf
    %1396 = vmax.xlane.f32.xlu0 %v1395
    %v1397 = vpop.xlane.xlu0 %1396
    %v1398 = vsel %vm159, %v1376, -inf
    %1399 = vmax.xlane.f32.xlu0 %v1398
    %v1400 = vpop.xlane.xlu0 %1399
    %v1401 = vsel %vm154, -inf, %v1361
    %v1402 = vsel %vm154, -inf, %v1362
    %v1403 = vsel %vm154, -inf, %v1363
    %v1404 = vsel %vm154, -inf, %v1364
    %v1405 = vsel %vm154, -inf, %v1365
    %v1406 = vsel %vm154, -inf, %v1366
    %v1407 = vsel %vm154, -inf, %v1367
    %v1408 = vsel %vm154, -inf, %v1368
    %v1409 = vsel %vm159, %v1401, -inf
    %1410 = vmax.xlane.f32.xlu0 %v1409
    %v1411 = vpop.xlane.xlu0 %1410
    %v1412 = vsel %vm159, %v1402, -inf
    %1413 = vmax.xlane.f32.xlu0 %v1412
    %v1414 = vpop.xlane.xlu0 %1413
    %v1415 = vsel %vm159, %v1403, -inf
    %1416 = vmax.xlane.f32.xlu0 %v1415
    %v1417 = vpop.xlane.xlu0 %1416
    %v1418 = vsel %vm159, %v1404, -inf
    %1419 = vmax.xlane.f32.xlu0 %v1418
    %v1420 = vpop.xlane.xlu0 %1419
    %v1421 = vsel %vm159, %v1405, -inf
    %1422 = vmax.xlane.f32.xlu0 %v1421
    %v1423 = vpop.xlane.xlu0 %1422
    %v1424 = vsel %vm159, %v1406, -inf
    %1425 = vmax.xlane.f32.xlu0 %v1424
    %v1426 = vpop.xlane.xlu0 %1425
    %v1427 = vsel %vm159, %v1407, -inf
    %1428 = vmax.xlane.f32.xlu0 %v1427
    %v1429 = vpop.xlane.xlu0 %1428
    %v1430 = vsel %vm159, %v1408, -inf
    %1431 = vmax.xlane.f32.xlu0 %v1430
    %v1432 = vpop.xlane.xlu0 %1431
    %v1433 = vsel %vm299, %v1379, %v1411
    %v1434 = vsel %vm299, %v1382, %v1414
    %v1435 = vsel %vm299, %v1385, %v1417
    %v1436 = vsel %vm299, %v1388, %v1420
    %v1437 = vsel %vm299, %v1391, %v1423
    %v1438 = vsel %vm299, %v1394, %v1426
    %v1439 = vsel %vm299, %v1397, %v1429
    %v1440 = vsel %vm299, %v1400, %v1432
    %s1441 = scalar_lea.vmem [#allocation2], 320
    %v1442 = vld [vmem:[%s1441] sm:$0xff]
    %v1443 = vld [vmem:[%s1441 + $0x8] sm:$0xff]
    %v1444 = vld [vmem:[%s1441 + $0x10] sm:$0xff]
    %v1445 = vld [vmem:[%s1441 + $0x18] sm:$0xff]
    %v1446 = vld [vmem:[%s1441 + $0x20] sm:$0xff]
    %v1447 = vld [vmem:[%s1441 + $0x28] sm:$0xff]
    %v1448 = vld [vmem:[%s1441 + $0x30] sm:$0xff]
    %v1449 = vld [vmem:[%s1441 + $0x38] sm:$0xff]
    %v1451 = vsel %vm56, %v1442, 0
    %v1454 = vsel %vm56, %v1443, 0
    %v1457 = vsel %vm56, %v1444, 0
    %v1460 = vsel %vm56, %v1445, 0
    %v1463 = vsel %vm56, %v1446, 0
    %v1466 = vsel %vm56, %v1447, 0
    %v1469 = vsel %vm56, %v1448, 0
    %v1472 = vsel %vm56, %v1449, 0
    %1474 = vmatprep.subr.mxu0 0.0
    %1475 = vmatpush1.msra.mxu0 0.0
    %1476 = vmatprep.subr.mxu0 0.0
    %1477 = vmatpush1.msra.mxu0 0.0
    %1478 = vmatprep.subr.mxu0 0.0
    %1479 = vmatpush1.msra.mxu0 0.0
    %1480 = vmatprep.subr.mxu0 0.0
    %1481 = vmatpush1.msra.mxu0 0.0
    %1482 = vmatprep.subr.mxu0 0.0
    %1483 = vmatpush1.msra.mxu0 0.0
    %1484 = vmatprep.subr.mxu0 0.0
    %1485 = vmatpush1.msra.mxu0 0.0
    %1486 = vmatprep.subr.mxu0 0.0
    %1487 = vmatpush1.msra.mxu0 0.0
    %1488 = vmatprep.subr.mxu0 0.0
    %1489 = vmatpush1.msra.mxu0 0.0
    %1490 = vmatprep.subr.mxu0 0.0
    %1491 = vmatpush1.msra.mxu0 %v1440
    %1492 = vmatprep.subr.mxu0 0.0
    %1493 = vmatpush1.msra.mxu0 %v1439
    %1494 = vmatprep.subr.mxu0 0.0
    %1495 = vmatpush1.msra.mxu0 %v1438
    %1496 = vmatprep.subr.mxu0 0.0
    %1497 = vmatpush1.msra.mxu0 %v1437
    %1498 = vmatprep.subr.mxu0 0.0
    %1499 = vmatpush1.msra.mxu0 %v1436
    %1500 = vmatprep.subr.mxu0 0.0
    %1501 = vmatpush1.msra.mxu0 %v1435
    %1502 = vmatprep.subr.mxu0 0.0
    %1503 = vmatpush1.msra.mxu0 %v1434
    %1504 = vmatprep.subr.mxu0 0.0
    %1505 = vmatpush1.msra.mxu0 %v1433
    %1506 = vmatprep.subr.mxu0 0.0
    %1507 = vmatpush2.msra.mxu0 0.0
    %1508 = vmatprep.subr.mxu0 0.0
    %1509 = vmatpush2.msra.mxu0 0.0
    %1510 = vmatprep.subr.mxu0 0.0
    %1511 = vmatpush2.msra.mxu0 0.0
    %1512 = vmatprep.subr.mxu0 0.0
    %1513 = vmatpush2.msra.mxu0 0.0
    %1514 = vmatprep.subr.mxu0 0.0
    %1515 = vmatpush2.msra.mxu0 0.0
    %1516 = vmatprep.subr.mxu0 0.0
    %1517 = vmatpush2.msra.mxu0 0.0
    %1518 = vmatprep.subr.mxu0 0.0
    %1519 = vmatpush2.msra.mxu0 0.0
    %1520 = vmatprep.subr.mxu0 0.0
    %1521 = vmatpush2.msra.mxu0 0.0
    %1522 = vmatprep.subr.mxu0 0.0
    %1523 = vmatpush2.msra.mxu0 0.0
    %1524 = vmatprep.subr.mxu0 0.0
    %1525 = vmatpush2.msra.mxu0 0.0
    %1526 = vmatprep.subr.mxu0 0.0
    %1527 = vmatpush2.msra.mxu0 0.0
    %1528 = vmatprep.subr.mxu0 0.0
    %1529 = vmatpush2.msra.mxu0 0.0
    %1530 = vmatprep.subr.mxu0 0.0
    %1531 = vmatpush2.msra.mxu0 0.0
    %1532 = vmatprep.subr.mxu0 0.0
    %1533 = vmatpush2.msra.mxu0 0.0
    %1534 = vmatprep.subr.mxu0 0.0
    %1535 = vmatpush2.msra.mxu0 0.0
    %1536 = vmatprep.subr.mxu0 0.0
    %1537 = vmatpush2.msra.mxu0 0.0
    %1538 = vmatprep.mubr.f32.mxu0 0.0
    %1539 = vmatmul.mubr.f32.gmra.mxu0 %v1451
    %v1540 = vpop.f32.mrf.mxu0
    %v1541 = vadd.f32 0.0, %v1540
    %v1542 = vpop.f32.mrf.mxu0
    %1543 = vmatprep.mubr.f32.mxu0 0.0
    %1544 = vmatmul.mubr.f32.gmra.mxu0 %v1454
    %v1545 = vpop.f32.mrf.mxu0
    %v1546 = vadd.f32 0.0, %v1545
    %v1547 = vpop.f32.mrf.mxu0
    %1548 = vmatprep.mubr.f32.mxu0 0.0
    %1549 = vmatmul.mubr.f32.gmra.mxu0 %v1457
    %v1550 = vpop.f32.mrf.mxu0
    %v1551 = vadd.f32 0.0, %v1550
    %v1552 = vpop.f32.mrf.mxu0
    %1553 = vmatprep.mubr.f32.mxu0 0.0
    %1554 = vmatmul.mubr.f32.gmra.mxu0 %v1460
    %v1555 = vpop.f32.mrf.mxu0
    %v1556 = vadd.f32 0.0, %v1555
    %v1557 = vpop.f32.mrf.mxu0
    %1558 = vmatprep.mubr.f32.mxu0 0.0
    %1559 = vmatmul.mubr.f32.gmra.mxu0 %v1463
    %v1560 = vpop.f32.mrf.mxu0
    %v1561 = vadd.f32 0.0, %v1560
    %v1562 = vpop.f32.mrf.mxu0
    %1563 = vmatprep.mubr.f32.mxu0 0.0
    %1564 = vmatmul.mubr.f32.gmra.mxu0 %v1466
    %v1565 = vpop.f32.mrf.mxu0
    %v1566 = vadd.f32 0.0, %v1565
    %v1567 = vpop.f32.mrf.mxu0
    %1568 = vmatprep.mubr.f32.mxu0 0.0
    %1569 = vmatmul.mubr.f32.gmra.mxu0 %v1469
    %v1570 = vpop.f32.mrf.mxu0
    %v1571 = vadd.f32 0.0, %v1570
    %v1572 = vpop.f32.mrf.mxu0
    %1573 = vmatprep.mubr.f32.mxu0 0.0
    %1574 = vmatmul.mubr.f32.gmra.mxu0 %v1472
    %v1575 = vpop.f32.mrf.mxu0
    %v1576 = vadd.f32 0.0, %v1575
    %v1577 = vpop.f32.mrf.mxu0
    %1578 = vdwg.mxu0
    %v1579 = vadd.f32 %v1349, %v1541
    %v1580 = vadd.f32 %v1350, %v1546
    %v1581 = vadd.f32 %v1351, %v1551
    %v1582 = vadd.f32 %v1352, %v1556
    %v1583 = vadd.f32 %v1353, %v1561
    %v1584 = vadd.f32 %v1354, %v1566
    %v1585 = vadd.f32 %v1355, %v1571
    %v1586 = vadd.f32 %v1356, %v1576
    %v1587 = vlaneseq
    %v1588 = vshrl.u32 %v1587, 7
    %v1589 = vsub.s32 6, %v1588
    %v1590 = vrot.slane %v221, %v1589
    %v1591 = vmul.f32 %v34, %v1590
    %v1592 = vmul.f32 %v35, %v1590
    %v1593 = vmul.f32 %v36, %v1590
    %v1594 = vmul.f32 %v37, %v1590
    %v1595 = vmul.f32 %v38, %v1590
    %v1596 = vmul.f32 %v39, %v1590
    %v1597 = vmul.f32 %v40, %v1590
    %v1598 = vmul.f32 %v41, %v1590
    %v1599 = vsel %vm154, %v1591, -inf
    %v1600 = vsel %vm154, %v1592, -inf
    %v1601 = vsel %vm154, %v1593, -inf
    %v1602 = vsel %vm154, %v1594, -inf
    %v1603 = vsel %vm154, %v1595, -inf
    %v1604 = vsel %vm154, %v1596, -inf
    %v1605 = vsel %vm154, %v1597, -inf
    %v1606 = vsel %vm154, %v1598, -inf
    %v1607 = vsel %vm159, %v1599, -inf
    %1608 = vmax.xlane.f32.xlu0 %v1607
    %v1609 = vpop.xlane.xlu0 %1608
    %v1610 = vsel %vm159, %v1600, -inf
    %1611 = vmax.xlane.f32.xlu0 %v1610
    %v1612 = vpop.xlane.xlu0 %1611
    %v1613 = vsel %vm159, %v1601, -inf
    %1614 = vmax.xlane.f32.xlu0 %v1613
    %v1615 = vpop.xlane.xlu0 %1614
    %v1616 = vsel %vm159, %v1602, -inf
    %1617 = vmax.xlane.f32.xlu0 %v1616
    %v1618 = vpop.xlane.xlu0 %1617
    %v1619 = vsel %vm159, %v1603, -inf
    %1620 = vmax.xlane.f32.xlu0 %v1619
    %v1621 = vpop.xlane.xlu0 %1620
    %v1622 = vsel %vm159, %v1604, -inf
    %1623 = vmax.xlane.f32.xlu0 %v1622
    %v1624 = vpop.xlane.xlu0 %1623
    %v1625 = vsel %vm159, %v1605, -inf
    %1626 = vmax.xlane.f32.xlu0 %v1625
    %v1627 = vpop.xlane.xlu0 %1626
    %v1628 = vsel %vm159, %v1606, -inf
    %1629 = vmax.xlane.f32.xlu0 %v1628
    %v1630 = vpop.xlane.xlu0 %1629
    %v1631 = vsel %vm154, -inf, %v1591
    %v1632 = vsel %vm154, -inf, %v1592
    %v1633 = vsel %vm154, -inf, %v1593
    %v1634 = vsel %vm154, -inf, %v1594
    %v1635 = vsel %vm154, -inf, %v1595
    %v1636 = vsel %vm154, -inf, %v1596
    %v1637 = vsel %vm154, -inf, %v1597
    %v1638 = vsel %vm154, -inf, %v1598
    %v1639 = vsel %vm159, %v1631, -inf
    %1640 = vmax.xlane.f32.xlu0 %v1639
    %v1641 = vpop.xlane.xlu0 %1640
    %v1642 = vsel %vm159, %v1632, -inf
    %1643 = vmax.xlane.f32.xlu0 %v1642
    %v1644 = vpop.xlane.xlu0 %1643
    %v1645 = vsel %vm159, %v1633, -inf
    %1646 = vmax.xlane.f32.xlu0 %v1645
    %v1647 = vpop.xlane.xlu0 %1646
    %v1648 = vsel %vm159, %v1634, -inf
    %1649 = vmax.xlane.f32.xlu0 %v1648
    %v1650 = vpop.xlane.xlu0 %1649
    %v1651 = vsel %vm159, %v1635, -inf
    %1652 = vmax.xlane.f32.xlu0 %v1651
    %v1653 = vpop.xlane.xlu0 %1652
    %v1654 = vsel %vm159, %v1636, -inf
    %1655 = vmax.xlane.f32.xlu0 %v1654
    %v1656 = vpop.xlane.xlu0 %1655
    %v1657 = vsel %vm159, %v1637, -inf
    %1658 = vmax.xlane.f32.xlu0 %v1657
    %v1659 = vpop.xlane.xlu0 %1658
    %v1660 = vsel %vm159, %v1638, -inf
    %1661 = vmax.xlane.f32.xlu0 %v1660
    %v1662 = vpop.xlane.xlu0 %1661
    %v1663 = vsel %vm299, %v1609, %v1641
    %v1664 = vsel %vm299, %v1612, %v1644
    %v1665 = vsel %vm299, %v1615, %v1647
    %v1666 = vsel %vm299, %v1618, %v1650
    %v1667 = vsel %vm299, %v1621, %v1653
    %v1668 = vsel %vm299, %v1624, %v1656
    %v1669 = vsel %vm299, %v1627, %v1659
    %v1670 = vsel %vm299, %v1630, %v1662
    %s1671 = scalar_lea.vmem [#allocation2], 384
    %v1672 = vld [vmem:[%s1671] sm:$0xff]
    %v1673 = vld [vmem:[%s1671 + $0x8] sm:$0xff]
    %v1674 = vld [vmem:[%s1671 + $0x10] sm:$0xff]
    %v1675 = vld [vmem:[%s1671 + $0x18] sm:$0xff]
    %v1676 = vld [vmem:[%s1671 + $0x20] sm:$0xff]
    %v1677 = vld [vmem:[%s1671 + $0x28] sm:$0xff]
    %v1678 = vld [vmem:[%s1671 + $0x30] sm:$0xff]
    %v1679 = vld [vmem:[%s1671 + $0x38] sm:$0xff]
    %v1681 = vsel %vm56, %v1672, 0
    %v1684 = vsel %vm56, %v1673, 0
    %v1687 = vsel %vm56, %v1674, 0
    %v1690 = vsel %vm56, %v1675, 0
    %v1693 = vsel %vm56, %v1676, 0
    %v1696 = vsel %vm56, %v1677, 0
    %v1699 = vsel %vm56, %v1678, 0
    %v1702 = vsel %vm56, %v1679, 0
    %1704 = vmatprep.subr.mxu0 0.0
    %1705 = vmatpush1.msra.mxu0 0.0
    %1706 = vmatprep.subr.mxu0 0.0
    %1707 = vmatpush1.msra.mxu0 0.0
    %1708 = vmatprep.subr.mxu0 0.0
    %1709 = vmatpush1.msra.mxu0 0.0
    %1710 = vmatprep.subr.mxu0 0.0
    %1711 = vmatpush1.msra.mxu0 0.0
    %1712 = vmatprep.subr.mxu0 0.0
    %1713 = vmatpush1.msra.mxu0 0.0
    %1714 = vmatprep.subr.mxu0 0.0
    %1715 = vmatpush1.msra.mxu0 0.0
    %1716 = vmatprep.subr.mxu0 0.0
    %1717 = vmatpush1.msra.mxu0 0.0
    %1718 = vmatprep.subr.mxu0 0.0
    %1719 = vmatpush1.msra.mxu0 0.0
    %1720 = vmatprep.subr.mxu0 0.0
    %1721 = vmatpush1.msra.mxu0 %v1670
    %1722 = vmatprep.subr.mxu0 0.0
    %1723 = vmatpush1.msra.mxu0 %v1669
    %1724 = vmatprep.subr.mxu0 0.0
    %1725 = vmatpush1.msra.mxu0 %v1668
    %1726 = vmatprep.subr.mxu0 0.0
    %1727 = vmatpush1.msra.mxu0 %v1667
    %1728 = vmatprep.subr.mxu0 0.0
    %1729 = vmatpush1.msra.mxu0 %v1666
    %1730 = vmatprep.subr.mxu0 0.0
    %1731 = vmatpush1.msra.mxu0 %v1665
    %1732 = vmatprep.subr.mxu0 0.0
    %1733 = vmatpush1.msra.mxu0 %v1664
    %1734 = vmatprep.subr.mxu0 0.0
    %1735 = vmatpush1.msra.mxu0 %v1663
    %1736 = vmatprep.subr.mxu0 0.0
    %1737 = vmatpush2.msra.mxu0 0.0
    %1738 = vmatprep.subr.mxu0 0.0
    %1739 = vmatpush2.msra.mxu0 0.0
    %1740 = vmatprep.subr.mxu0 0.0
    %1741 = vmatpush2.msra.mxu0 0.0
    %1742 = vmatprep.subr.mxu0 0.0
    %1743 = vmatpush2.msra.mxu0 0.0
    %1744 = vmatprep.subr.mxu0 0.0
    %1745 = vmatpush2.msra.mxu0 0.0
    %1746 = vmatprep.subr.mxu0 0.0
    %1747 = vmatpush2.msra.mxu0 0.0
    %1748 = vmatprep.subr.mxu0 0.0
    %1749 = vmatpush2.msra.mxu0 0.0
    %1750 = vmatprep.subr.mxu0 0.0
    %1751 = vmatpush2.msra.mxu0 0.0
    %1752 = vmatprep.subr.mxu0 0.0
    %1753 = vmatpush2.msra.mxu0 0.0
    %1754 = vmatprep.subr.mxu0 0.0
    %1755 = vmatpush2.msra.mxu0 0.0
    %1756 = vmatprep.subr.mxu0 0.0
    %1757 = vmatpush2.msra.mxu0 0.0
    %1758 = vmatprep.subr.mxu0 0.0
    %1759 = vmatpush2.msra.mxu0 0.0
    %1760 = vmatprep.subr.mxu0 0.0
    %1761 = vmatpush2.msra.mxu0 0.0
    %1762 = vmatprep.subr.mxu0 0.0
    %1763 = vmatpush2.msra.mxu0 0.0
    %1764 = vmatprep.subr.mxu0 0.0
    %1765 = vmatpush2.msra.mxu0 0.0
    %1766 = vmatprep.subr.mxu0 0.0
    %1767 = vmatpush2.msra.mxu0 0.0
    %1768 = vmatprep.mubr.f32.mxu0 0.0
    %1769 = vmatmul.mubr.f32.gmra.mxu0 %v1681
    %v1770 = vpop.f32.mrf.mxu0
    %v1771 = vadd.f32 0.0, %v1770
    %v1772 = vpop.f32.mrf.mxu0
    %1773 = vmatprep.mubr.f32.mxu0 0.0
    %1774 = vmatmul.mubr.f32.gmra.mxu0 %v1684
    %v1775 = vpop.f32.mrf.mxu0
    %v1776 = vadd.f32 0.0, %v1775
    %v1777 = vpop.f32.mrf.mxu0
    %1778 = vmatprep.mubr.f32.mxu0 0.0
    %1779 = vmatmul.mubr.f32.gmra.mxu0 %v1687
    %v1780 = vpop.f32.mrf.mxu0
    %v1781 = vadd.f32 0.0, %v1780
    %v1782 = vpop.f32.mrf.mxu0
    %1783 = vmatprep.mubr.f32.mxu0 0.0
    %1784 = vmatmul.mubr.f32.gmra.mxu0 %v1690
    %v1785 = vpop.f32.mrf.mxu0
    %v1786 = vadd.f32 0.0, %v1785
    %v1787 = vpop.f32.mrf.mxu0
    %1788 = vmatprep.mubr.f32.mxu0 0.0
    %1789 = vmatmul.mubr.f32.gmra.mxu0 %v1693
    %v1790 = vpop.f32.mrf.mxu0
    %v1791 = vadd.f32 0.0, %v1790
    %v1792 = vpop.f32.mrf.mxu0
    %1793 = vmatprep.mubr.f32.mxu0 0.0
    %1794 = vmatmul.mubr.f32.gmra.mxu0 %v1696
    %v1795 = vpop.f32.mrf.mxu0
    %v1796 = vadd.f32 0.0, %v1795
    %v1797 = vpop.f32.mrf.mxu0
    %1798 = vmatprep.mubr.f32.mxu0 0.0
    %1799 = vmatmul.mubr.f32.gmra.mxu0 %v1699
    %v1800 = vpop.f32.mrf.mxu0
    %v1801 = vadd.f32 0.0, %v1800
    %v1802 = vpop.f32.mrf.mxu0
    %1803 = vmatprep.mubr.f32.mxu0 0.0
    %1804 = vmatmul.mubr.f32.gmra.mxu0 %v1702
    %v1805 = vpop.f32.mrf.mxu0
    %v1806 = vadd.f32 0.0, %v1805
    %v1807 = vpop.f32.mrf.mxu0
    %1808 = vdwg.mxu0
    %v1809 = vadd.f32 %v1579, %v1771
    %v1810 = vadd.f32 %v1580, %v1776
    %v1811 = vadd.f32 %v1581, %v1781
    %v1812 = vadd.f32 %v1582, %v1786
    %v1813 = vadd.f32 %v1583, %v1791
    %v1814 = vadd.f32 %v1584, %v1796
    %v1815 = vadd.f32 %v1585, %v1801
    %v1816 = vadd.f32 %v1586, %v1806
    %v1817 = vlaneseq
    %v1818 = vshrl.u32 %v1817, 7
    %v1819 = vsub.s32 7, %v1818
    %v1820 = vrot.slane %v221, %v1819
    %v1821 = vmul.f32 %v34, %v1820
    %v1822 = vmul.f32 %v35, %v1820
    %v1823 = vmul.f32 %v36, %v1820
    %v1824 = vmul.f32 %v37, %v1820
    %v1825 = vmul.f32 %v38, %v1820
    %v1826 = vmul.f32 %v39, %v1820
    %v1827 = vmul.f32 %v40, %v1820
    %v1828 = vmul.f32 %v41, %v1820
    %v1829 = vsel %vm154, %v1821, -inf
    %v1830 = vsel %vm154, %v1822, -inf
    %v1831 = vsel %vm154, %v1823, -inf
    %v1832 = vsel %vm154, %v1824, -inf
    %v1833 = vsel %vm154, %v1825, -inf
    %v1834 = vsel %vm154, %v1826, -inf
    %v1835 = vsel %vm154, %v1827, -inf
    %v1836 = vsel %vm154, %v1828, -inf
    %v1837 = vsel %vm159, %v1829, -inf
    %1838 = vmax.xlane.f32.xlu0 %v1837
    %v1839 = vpop.xlane.xlu0 %1838
    %v1840 = vsel %vm159, %v1830, -inf
    %1841 = vmax.xlane.f32.xlu0 %v1840
    %v1842 = vpop.xlane.xlu0 %1841
    %v1843 = vsel %vm159, %v1831, -inf
    %1844 = vmax.xlane.f32.xlu0 %v1843
    %v1845 = vpop.xlane.xlu0 %1844
    %v1846 = vsel %vm159, %v1832, -inf
    %1847 = vmax.xlane.f32.xlu0 %v1846
    %v1848 = vpop.xlane.xlu0 %1847
    %v1849 = vsel %vm159, %v1833, -inf
    %1850 = vmax.xlane.f32.xlu0 %v1849
    %v1851 = vpop.xlane.xlu0 %1850
    %v1852 = vsel %vm159, %v1834, -inf
    %1853 = vmax.xlane.f32.xlu0 %v1852
    %v1854 = vpop.xlane.xlu0 %1853
    %v1855 = vsel %vm159, %v1835, -inf
    %1856 = vmax.xlane.f32.xlu0 %v1855
    %v1857 = vpop.xlane.xlu0 %1856
    %v1858 = vsel %vm159, %v1836, -inf
    %1859 = vmax.xlane.f32.xlu0 %v1858
    %v1860 = vpop.xlane.xlu0 %1859
    %v1861 = vsel %vm154, -inf, %v1821
    %v1862 = vsel %vm154, -inf, %v1822
    %v1863 = vsel %vm154, -inf, %v1823
    %v1864 = vsel %vm154, -inf, %v1824
    %v1865 = vsel %vm154, -inf, %v1825
    %v1866 = vsel %vm154, -inf, %v1826
    %v1867 = vsel %vm154, -inf, %v1827
    %v1868 = vsel %vm154, -inf, %v1828
    %v1869 = vsel %vm159, %v1861, -inf
    %1870 = vmax.xlane.f32.xlu0 %v1869
    %v1871 = vpop.xlane.xlu0 %1870
    %v1872 = vsel %vm159, %v1862, -inf
    %1873 = vmax.xlane.f32.xlu0 %v1872
    %v1874 = vpop.xlane.xlu0 %1873
    %v1875 = vsel %vm159, %v1863, -inf
    %1876 = vmax.xlane.f32.xlu0 %v1875
    %v1877 = vpop.xlane.xlu0 %1876
    %v1878 = vsel %vm159, %v1864, -inf
    %1879 = vmax.xlane.f32.xlu0 %v1878
    %v1880 = vpop.xlane.xlu0 %1879
    %v1881 = vsel %vm159, %v1865, -inf
    %1882 = vmax.xlane.f32.xlu0 %v1881
    %v1883 = vpop.xlane.xlu0 %1882
    %v1884 = vsel %vm159, %v1866, -inf
    %1885 = vmax.xlane.f32.xlu0 %v1884
    %v1886 = vpop.xlane.xlu0 %1885
    %v1887 = vsel %vm159, %v1867, -inf
    %1888 = vmax.xlane.f32.xlu0 %v1887
    %v1889 = vpop.xlane.xlu0 %1888
    %v1890 = vsel %vm159, %v1868, -inf
    %1891 = vmax.xlane.f32.xlu0 %v1890
    %v1892 = vpop.xlane.xlu0 %1891
    %v1893 = vsel %vm299, %v1839, %v1871
    %v1894 = vsel %vm299, %v1842, %v1874
    %v1895 = vsel %vm299, %v1845, %v1877
    %v1896 = vsel %vm299, %v1848, %v1880
    %v1897 = vsel %vm299, %v1851, %v1883
    %v1898 = vsel %vm299, %v1854, %v1886
    %v1899 = vsel %vm299, %v1857, %v1889
    %v1900 = vsel %vm299, %v1860, %v1892
    %s1901 = scalar_lea.vmem [#allocation2], 448
    %v1902 = vld [vmem:[%s1901] sm:$0xff]
    %v1903 = vld [vmem:[%s1901 + $0x8] sm:$0xff]
    %v1904 = vld [vmem:[%s1901 + $0x10] sm:$0xff]
    %v1905 = vld [vmem:[%s1901 + $0x18] sm:$0xff]
    %v1906 = vld [vmem:[%s1901 + $0x20] sm:$0xff]
    %v1907 = vld [vmem:[%s1901 + $0x28] sm:$0xff]
    %v1908 = vld [vmem:[%s1901 + $0x30] sm:$0xff]
    %v1909 = vld [vmem:[%s1901 + $0x38] sm:$0xff]
    %v1911 = vsel %vm56, %v1902, 0
    %v1914 = vsel %vm56, %v1903, 0
    %v1917 = vsel %vm56, %v1904, 0
    %v1920 = vsel %vm56, %v1905, 0
    %v1923 = vsel %vm56, %v1906, 0
    %v1926 = vsel %vm56, %v1907, 0
    %v1929 = vsel %vm56, %v1908, 0
    %v1932 = vsel %vm56, %v1909, 0
    %1934 = vmatprep.subr.mxu0 0.0
    %1935 = vmatpush1.msra.mxu0 0.0
    %1936 = vmatprep.subr.mxu0 0.0
    %1937 = vmatpush1.msra.mxu0 0.0
    %1938 = vmatprep.subr.mxu0 0.0
    %1939 = vmatpush1.msra.mxu0 0.0
    %1940 = vmatprep.subr.mxu0 0.0
    %1941 = vmatpush1.msra.mxu0 0.0
    %1942 = vmatprep.subr.mxu0 0.0
    %1943 = vmatpush1.msra.mxu0 0.0
    %1944 = vmatprep.subr.mxu0 0.0
    %1945 = vmatpush1.msra.mxu0 0.0
    %1946 = vmatprep.subr.mxu0 0.0
    %1947 = vmatpush1.msra.mxu0 0.0
    %1948 = vmatprep.subr.mxu0 0.0
    %1949 = vmatpush1.msra.mxu0 0.0
    %1950 = vmatprep.subr.mxu0 0.0
    %1951 = vmatpush1.msra.mxu0 %v1900
    %1952 = vmatprep.subr.mxu0 0.0
    %1953 = vmatpush1.msra.mxu0 %v1899
    %1954 = vmatprep.subr.mxu0 0.0
    %1955 = vmatpush1.msra.mxu0 %v1898
    %1956 = vmatprep.subr.mxu0 0.0
    %1957 = vmatpush1.msra.mxu0 %v1897
    %1958 = vmatprep.subr.mxu0 0.0
    %1959 = vmatpush1.msra.mxu0 %v1896
    %1960 = vmatprep.subr.mxu0 0.0
    %1961 = vmatpush1.msra.mxu0 %v1895
    %1962 = vmatprep.subr.mxu0 0.0
    %1963 = vmatpush1.msra.mxu0 %v1894
    %1964 = vmatprep.subr.mxu0 0.0
    %1965 = vmatpush1.msra.mxu0 %v1893
    %1966 = vmatprep.subr.mxu0 0.0
    %1967 = vmatpush2.msra.mxu0 0.0
    %1968 = vmatprep.subr.mxu0 0.0
    %1969 = vmatpush2.msra.mxu0 0.0
    %1970 = vmatprep.subr.mxu0 0.0
    %1971 = vmatpush2.msra.mxu0 0.0
    %1972 = vmatprep.subr.mxu0 0.0
    %1973 = vmatpush2.msra.mxu0 0.0
    %1974 = vmatprep.subr.mxu0 0.0
    %1975 = vmatpush2.msra.mxu0 0.0
    %1976 = vmatprep.subr.mxu0 0.0
    %1977 = vmatpush2.msra.mxu0 0.0
    %1978 = vmatprep.subr.mxu0 0.0
    %1979 = vmatpush2.msra.mxu0 0.0
    %1980 = vmatprep.subr.mxu0 0.0
    %1981 = vmatpush2.msra.mxu0 0.0
    %1982 = vmatprep.subr.mxu0 0.0
    %1983 = vmatpush2.msra.mxu0 0.0
    %1984 = vmatprep.subr.mxu0 0.0
    %1985 = vmatpush2.msra.mxu0 0.0
    %1986 = vmatprep.subr.mxu0 0.0
    %1987 = vmatpush2.msra.mxu0 0.0
    %1988 = vmatprep.subr.mxu0 0.0
    %1989 = vmatpush2.msra.mxu0 0.0
    %1990 = vmatprep.subr.mxu0 0.0
    %1991 = vmatpush2.msra.mxu0 0.0
    %1992 = vmatprep.subr.mxu0 0.0
    %1993 = vmatpush2.msra.mxu0 0.0
    %1994 = vmatprep.subr.mxu0 0.0
    %1995 = vmatpush2.msra.mxu0 0.0
    %1996 = vmatprep.subr.mxu0 0.0
    %1997 = vmatpush2.msra.mxu0 0.0
    %1998 = vmatprep.mubr.f32.mxu0 0.0
    %1999 = vmatmul.mubr.f32.gmra.mxu0 %v1911
    %v2000 = vpop.f32.mrf.mxu0
    %v2001 = vadd.f32 0.0, %v2000
    %v2002 = vpop.f32.mrf.mxu0
    %2003 = vmatprep.mubr.f32.mxu0 0.0
    %2004 = vmatmul.mubr.f32.gmra.mxu0 %v1914
    %v2005 = vpop.f32.mrf.mxu0
    %v2006 = vadd.f32 0.0, %v2005
    %v2007 = vpop.f32.mrf.mxu0
    %2008 = vmatprep.mubr.f32.mxu0 0.0
    %2009 = vmatmul.mubr.f32.gmra.mxu0 %v1917
    %v2010 = vpop.f32.mrf.mxu0
    %v2011 = vadd.f32 0.0, %v2010
    %v2012 = vpop.f32.mrf.mxu0
    %2013 = vmatprep.mubr.f32.mxu0 0.0
    %2014 = vmatmul.mubr.f32.gmra.mxu0 %v1920
    %v2015 = vpop.f32.mrf.mxu0
    %v2016 = vadd.f32 0.0, %v2015
    %v2017 = vpop.f32.mrf.mxu0
    %2018 = vmatprep.mubr.f32.mxu0 0.0
    %2019 = vmatmul.mubr.f32.gmra.mxu0 %v1923
    %v2020 = vpop.f32.mrf.mxu0
    %v2021 = vadd.f32 0.0, %v2020
    %v2022 = vpop.f32.mrf.mxu0
    %2023 = vmatprep.mubr.f32.mxu0 0.0
    %2024 = vmatmul.mubr.f32.gmra.mxu0 %v1926
    %v2025 = vpop.f32.mrf.mxu0
    %v2026 = vadd.f32 0.0, %v2025
    %v2027 = vpop.f32.mrf.mxu0
    %2028 = vmatprep.mubr.f32.mxu0 0.0
    %2029 = vmatmul.mubr.f32.gmra.mxu0 %v1929
    %v2030 = vpop.f32.mrf.mxu0
    %v2031 = vadd.f32 0.0, %v2030
    %v2032 = vpop.f32.mrf.mxu0
    %2033 = vmatprep.mubr.f32.mxu0 0.0
    %2034 = vmatmul.mubr.f32.gmra.mxu0 %v1932
    %v2035 = vpop.f32.mrf.mxu0
    %v2036 = vadd.f32 0.0, %v2035
    %v2037 = vpop.f32.mrf.mxu0
    %2038 = vdwg.mxu0
    %v2039 = vadd.f32 %v1809, %v2001
    %v2040 = vadd.f32 %v1810, %v2006
    %v2041 = vadd.f32 %v1811, %v2011
    %v2042 = vadd.f32 %v1812, %v2016
    %v2043 = vadd.f32 %v1813, %v2021
    %v2044 = vadd.f32 %v1814, %v2026
    %v2045 = vadd.f32 %v1815, %v2031
    %v2046 = vadd.f32 %v1816, %v2036
    %v2047 = vlaneseq
    %v2048 = vshrl.u32 %v2047, 7
    %v2049 = vsub.s32 0, %v2048
    %v2050 = vrot.slane %v222, %v2049
    %v2051 = vmul.f32 %v34, %v2050
    %v2052 = vmul.f32 %v35, %v2050
    %v2053 = vmul.f32 %v36, %v2050
    %v2054 = vmul.f32 %v37, %v2050
    %v2055 = vmul.f32 %v38, %v2050
    %v2056 = vmul.f32 %v39, %v2050
    %v2057 = vmul.f32 %v40, %v2050
    %v2058 = vmul.f32 %v41, %v2050
    %v2059 = vsel %vm154, %v2051, -inf
    %v2060 = vsel %vm154, %v2052, -inf
    %v2061 = vsel %vm154, %v2053, -inf
    %v2062 = vsel %vm154, %v2054, -inf
    %v2063 = vsel %vm154, %v2055, -inf
    %v2064 = vsel %vm154, %v2056, -inf
    %v2065 = vsel %vm154, %v2057, -inf
    %v2066 = vsel %vm154, %v2058, -inf
    %v2067 = vsel %vm159, %v2059, -inf
    %2068 = vmax.xlane.f32.xlu0 %v2067
    %v2069 = vpop.xlane.xlu0 %2068
    %v2070 = vsel %vm159, %v2060, -inf
    %2071 = vmax.xlane.f32.xlu0 %v2070
    %v2072 = vpop.xlane.xlu0 %2071
    %v2073 = vsel %vm159, %v2061, -inf
    %2074 = vmax.xlane.f32.xlu0 %v2073
    %v2075 = vpop.xlane.xlu0 %2074
    %v2076 = vsel %vm159, %v2062, -inf
    %2077 = vmax.xlane.f32.xlu0 %v2076
    %v2078 = vpop.xlane.xlu0 %2077
    %v2079 = vsel %vm159, %v2063, -inf
    %2080 = vmax.xlane.f32.xlu0 %v2079
    %v2081 = vpop.xlane.xlu0 %2080
    %v2082 = vsel %vm159, %v2064, -inf
    %2083 = vmax.xlane.f32.xlu0 %v2082
    %v2084 = vpop.xlane.xlu0 %2083
    %v2085 = vsel %vm159, %v2065, -inf
    %2086 = vmax.xlane.f32.xlu0 %v2085
    %v2087 = vpop.xlane.xlu0 %2086
    %v2088 = vsel %vm159, %v2066, -inf
    %2089 = vmax.xlane.f32.xlu0 %v2088
    %v2090 = vpop.xlane.xlu0 %2089
    %v2091 = vsel %vm154, -inf, %v2051
    %v2092 = vsel %vm154, -inf, %v2052
    %v2093 = vsel %vm154, -inf, %v2053
    %v2094 = vsel %vm154, -inf, %v2054
    %v2095 = vsel %vm154, -inf, %v2055
    %v2096 = vsel %vm154, -inf, %v2056
    %v2097 = vsel %vm154, -inf, %v2057
    %v2098 = vsel %vm154, -inf, %v2058
    %v2099 = vsel %vm159, %v2091, -inf
    %2100 = vmax.xlane.f32.xlu0 %v2099
    %v2101 = vpop.xlane.xlu0 %2100
    %v2102 = vsel %vm159, %v2092, -inf
    %2103 = vmax.xlane.f32.xlu0 %v2102
    %v2104 = vpop.xlane.xlu0 %2103
    %v2105 = vsel %vm159, %v2093, -inf
    %2106 = vmax.xlane.f32.xlu0 %v2105
    %v2107 = vpop.xlane.xlu0 %2106
    %v2108 = vsel %vm159, %v2094, -inf
    %2109 = vmax.xlane.f32.xlu0 %v2108
    %v2110 = vpop.xlane.xlu0 %2109
    %v2111 = vsel %vm159, %v2095, -inf
    %2112 = vmax.xlane.f32.xlu0 %v2111
    %v2113 = vpop.xlane.xlu0 %2112
    %v2114 = vsel %vm159, %v2096, -inf
    %2115 = vmax.xlane.f32.xlu0 %v2114
    %v2116 = vpop.xlane.xlu0 %2115
    %v2117 = vsel %vm159, %v2097, -inf
    %2118 = vmax.xlane.f32.xlu0 %v2117
    %v2119 = vpop.xlane.xlu0 %2118
    %v2120 = vsel %vm159, %v2098, -inf
    %2121 = vmax.xlane.f32.xlu0 %v2120
    %v2122 = vpop.xlane.xlu0 %2121
    %v2123 = vsel %vm299, %v2069, %v2101
    %v2124 = vsel %vm299, %v2072, %v2104
    %v2125 = vsel %vm299, %v2075, %v2107
    %v2126 = vsel %vm299, %v2078, %v2110
    %v2127 = vsel %vm299, %v2081, %v2113
    %v2128 = vsel %vm299, %v2084, %v2116
    %v2129 = vsel %vm299, %v2087, %v2119
    %v2130 = vsel %vm299, %v2090, %v2122
    %s2131 = scalar_lea.vmem [#allocation2], 512
    %v2132 = vld [vmem:[%s2131] sm:$0xff]
    %v2133 = vld [vmem:[%s2131 + $0x8] sm:$0xff]
    %v2134 = vld [vmem:[%s2131 + $0x10] sm:$0xff]
    %v2135 = vld [vmem:[%s2131 + $0x18] sm:$0xff]
    %v2136 = vld [vmem:[%s2131 + $0x20] sm:$0xff]
    %v2137 = vld [vmem:[%s2131 + $0x28] sm:$0xff]
    %v2138 = vld [vmem:[%s2131 + $0x30] sm:$0xff]
    %v2139 = vld [vmem:[%s2131 + $0x38] sm:$0xff]
    %v2141 = vsel %vm56, %v2132, 0
    %v2144 = vsel %vm56, %v2133, 0
    %v2147 = vsel %vm56, %v2134, 0
    %v2150 = vsel %vm56, %v2135, 0
    %v2153 = vsel %vm56, %v2136, 0
    %v2156 = vsel %vm56, %v2137, 0
    %v2159 = vsel %vm56, %v2138, 0
    %v2162 = vsel %vm56, %v2139, 0
    %2164 = vmatprep.subr.mxu0 0.0
    %2165 = vmatpush1.msra.mxu0 0.0
    %2166 = vmatprep.subr.mxu0 0.0
    %2167 = vmatpush1.msra.mxu0 0.0
    %2168 = vmatprep.subr.mxu0 0.0
    %2169 = vmatpush1.msra.mxu0 0.0
    %2170 = vmatprep.subr.mxu0 0.0
    %2171 = vmatpush1.msra.mxu0 0.0
    %2172 = vmatprep.subr.mxu0 0.0
    %2173 = vmatpush1.msra.mxu0 0.0
    %2174 = vmatprep.subr.mxu0 0.0
    %2175 = vmatpush1.msra.mxu0 0.0
    %2176 = vmatprep.subr.mxu0 0.0
    %2177 = vmatpush1.msra.mxu0 0.0
    %2178 = vmatprep.subr.mxu0 0.0
    %2179 = vmatpush1.msra.mxu0 0.0
    %2180 = vmatprep.subr.mxu0 0.0
    %2181 = vmatpush1.msra.mxu0 %v2130
    %2182 = vmatprep.subr.mxu0 0.0
    %2183 = vmatpush1.msra.mxu0 %v2129
    %2184 = vmatprep.subr.mxu0 0.0
    %2185 = vmatpush1.msra.mxu0 %v2128
    %2186 = vmatprep.subr.mxu0 0.0
    %2187 = vmatpush1.msra.mxu0 %v2127
    %2188 = vmatprep.subr.mxu0 0.0
    %2189 = vmatpush1.msra.mxu0 %v2126
    %2190 = vmatprep.subr.mxu0 0.0
    %2191 = vmatpush1.msra.mxu0 %v2125
    %2192 = vmatprep.subr.mxu0 0.0
    %2193 = vmatpush1.msra.mxu0 %v2124
    %2194 = vmatprep.subr.mxu0 0.0
    %2195 = vmatpush1.msra.mxu0 %v2123
    %2196 = vmatprep.subr.mxu0 0.0
    %2197 = vmatpush2.msra.mxu0 0.0
    %2198 = vmatprep.subr.mxu0 0.0
    %2199 = vmatpush2.msra.mxu0 0.0
    %2200 = vmatprep.subr.mxu0 0.0
    %2201 = vmatpush2.msra.mxu0 0.0
    %2202 = vmatprep.subr.mxu0 0.0
    %2203 = vmatpush2.msra.mxu0 0.0
    %2204 = vmatprep.subr.mxu0 0.0
    %2205 = vmatpush2.msra.mxu0 0.0
    %2206 = vmatprep.subr.mxu0 0.0
    %2207 = vmatpush2.msra.mxu0 0.0
    %2208 = vmatprep.subr.mxu0 0.0
    %2209 = vmatpush2.msra.mxu0 0.0
    %2210 = vmatprep.subr.mxu0 0.0
    %2211 = vmatpush2.msra.mxu0 0.0
    %2212 = vmatprep.subr.mxu0 0.0
    %2213 = vmatpush2.msra.mxu0 0.0
    %2214 = vmatprep.subr.mxu0 0.0
    %2215 = vmatpush2.msra.mxu0 0.0
    %2216 = vmatprep.subr.mxu0 0.0
    %2217 = vmatpush2.msra.mxu0 0.0
    %2218 = vmatprep.subr.mxu0 0.0
    %2219 = vmatpush2.msra.mxu0 0.0
    %2220 = vmatprep.subr.mxu0 0.0
    %2221 = vmatpush2.msra.mxu0 0.0
    %2222 = vmatprep.subr.mxu0 0.0
    %2223 = vmatpush2.msra.mxu0 0.0
    %2224 = vmatprep.subr.mxu0 0.0
    %2225 = vmatpush2.msra.mxu0 0.0
    %2226 = vmatprep.subr.mxu0 0.0
    %2227 = vmatpush2.msra.mxu0 0.0
    %2228 = vmatprep.mubr.f32.mxu0 0.0
    %2229 = vmatmul.mubr.f32.gmra.mxu0 %v2141
    %v2230 = vpop.f32.mrf.mxu0
    %v2231 = vadd.f32 0.0, %v2230
    %v2232 = vpop.f32.mrf.mxu0
    %2233 = vmatprep.mubr.f32.mxu0 0.0
    %2234 = vmatmul.mubr.f32.gmra.mxu0 %v2144
    %v2235 = vpop.f32.mrf.mxu0
    %v2236 = vadd.f32 0.0, %v2235
    %v2237 = vpop.f32.mrf.mxu0
    %2238 = vmatprep.mubr.f32.mxu0 0.0
    %2239 = vmatmul.mubr.f32.gmra.mxu0 %v2147
    %v2240 = vpop.f32.mrf.mxu0
    %v2241 = vadd.f32 0.0, %v2240
    %v2242 = vpop.f32.mrf.mxu0
    %2243 = vmatprep.mubr.f32.mxu0 0.0
    %2244 = vmatmul.mubr.f32.gmra.mxu0 %v2150
    %v2245 = vpop.f32.mrf.mxu0
    %v2246 = vadd.f32 0.0, %v2245
    %v2247 = vpop.f32.mrf.mxu0
    %2248 = vmatprep.mubr.f32.mxu0 0.0
    %2249 = vmatmul.mubr.f32.gmra.mxu0 %v2153
    %v2250 = vpop.f32.mrf.mxu0
    %v2251 = vadd.f32 0.0, %v2250
    %v2252 = vpop.f32.mrf.mxu0
    %2253 = vmatprep.mubr.f32.mxu0 0.0
    %2254 = vmatmul.mubr.f32.gmra.mxu0 %v2156
    %v2255 = vpop.f32.mrf.mxu0
    %v2256 = vadd.f32 0.0, %v2255
    %v2257 = vpop.f32.mrf.mxu0
    %2258 = vmatprep.mubr.f32.mxu0 0.0
    %2259 = vmatmul.mubr.f32.gmra.mxu0 %v2159
    %v2260 = vpop.f32.mrf.mxu0
    %v2261 = vadd.f32 0.0, %v2260
    %v2262 = vpop.f32.mrf.mxu0
    %2263 = vmatprep.mubr.f32.mxu0 0.0
    %2264 = vmatmul.mubr.f32.gmra.mxu0 %v2162
    %v2265 = vpop.f32.mrf.mxu0
    %v2266 = vadd.f32 0.0, %v2265
    %v2267 = vpop.f32.mrf.mxu0
    %2268 = vdwg.mxu0
    %v2269 = vadd.f32 %v2039, %v2231
    %v2270 = vadd.f32 %v2040, %v2236
    %v2271 = vadd.f32 %v2041, %v2241
    %v2272 = vadd.f32 %v2042, %v2246
    %v2273 = vadd.f32 %v2043, %v2251
    %v2274 = vadd.f32 %v2044, %v2256
    %v2275 = vadd.f32 %v2045, %v2261
    %v2276 = vadd.f32 %v2046, %v2266
    %v2277 = vlaneseq
    %v2278 = vshrl.u32 %v2277, 7
    %v2279 = vsub.s32 1, %v2278
    %v2280 = vrot.slane %v222, %v2279
    %v2281 = vmul.f32 %v34, %v2280
    %v2282 = vmul.f32 %v35, %v2280
    %v2283 = vmul.f32 %v36, %v2280
    %v2284 = vmul.f32 %v37, %v2280
    %v2285 = vmul.f32 %v38, %v2280
    %v2286 = vmul.f32 %v39, %v2280
    %v2287 = vmul.f32 %v40, %v2280
    %v2288 = vmul.f32 %v41, %v2280
    %v2289 = vsel %vm154, %v2281, -inf
    %v2290 = vsel %vm154, %v2282, -inf
    %v2291 = vsel %vm154, %v2283, -inf
    %v2292 = vsel %vm154, %v2284, -inf
    %v2293 = vsel %vm154, %v2285, -inf
    %v2294 = vsel %vm154, %v2286, -inf
    %v2295 = vsel %vm154, %v2287, -inf
    %v2296 = vsel %vm154, %v2288, -inf
    %v2297 = vsel %vm159, %v2289, -inf
    %2298 = vmax.xlane.f32.xlu0 %v2297
    %v2299 = vpop.xlane.xlu0 %2298
    %v2300 = vsel %vm159, %v2290, -inf
    %2301 = vmax.xlane.f32.xlu0 %v2300
    %v2302 = vpop.xlane.xlu0 %2301
    %v2303 = vsel %vm159, %v2291, -inf
    %2304 = vmax.xlane.f32.xlu0 %v2303
    %v2305 = vpop.xlane.xlu0 %2304
    %v2306 = vsel %vm159, %v2292, -inf
    %2307 = vmax.xlane.f32.xlu0 %v2306
    %v2308 = vpop.xlane.xlu0 %2307
    %v2309 = vsel %vm159, %v2293, -inf
    %2310 = vmax.xlane.f32.xlu0 %v2309
    %v2311 = vpop.xlane.xlu0 %2310
    %v2312 = vsel %vm159, %v2294, -inf
    %2313 = vmax.xlane.f32.xlu0 %v2312
    %v2314 = vpop.xlane.xlu0 %2313
    %v2315 = vsel %vm159, %v2295, -inf
    %2316 = vmax.xlane.f32.xlu0 %v2315
    %v2317 = vpop.xlane.xlu0 %2316
    %v2318 = vsel %vm159, %v2296, -inf
    %2319 = vmax.xlane.f32.xlu0 %v2318
    %v2320 = vpop.xlane.xlu0 %2319
    %v2321 = vsel %vm154, -inf, %v2281
    %v2322 = vsel %vm154, -inf, %v2282
    %v2323 = vsel %vm154, -inf, %v2283
    %v2324 = vsel %vm154, -inf, %v2284
    %v2325 = vsel %vm154, -inf, %v2285
    %v2326 = vsel %vm154, -inf, %v2286
    %v2327 = vsel %vm154, -inf, %v2287
    %v2328 = vsel %vm154, -inf, %v2288
    %v2329 = vsel %vm159, %v2321, -inf
    %2330 = vmax.xlane.f32.xlu0 %v2329
    %v2331 = vpop.xlane.xlu0 %2330
    %v2332 = vsel %vm159, %v2322, -inf
    %2333 = vmax.xlane.f32.xlu0 %v2332
    %v2334 = vpop.xlane.xlu0 %2333
    %v2335 = vsel %vm159, %v2323, -inf
    %2336 = vmax.xlane.f32.xlu0 %v2335
    %v2337 = vpop.xlane.xlu0 %2336
    %v2338 = vsel %vm159, %v2324, -inf
    %2339 = vmax.xlane.f32.xlu0 %v2338
    %v2340 = vpop.xlane.xlu0 %2339
    %v2341 = vsel %vm159, %v2325, -inf
    %2342 = vmax.xlane.f32.xlu0 %v2341
    %v2343 = vpop.xlane.xlu0 %2342
    %v2344 = vsel %vm159, %v2326, -inf
    %2345 = vmax.xlane.f32.xlu0 %v2344
    %v2346 = vpop.xlane.xlu0 %2345
    %v2347 = vsel %vm159, %v2327, -inf
    %2348 = vmax.xlane.f32.xlu0 %v2347
    %v2349 = vpop.xlane.xlu0 %2348
    %v2350 = vsel %vm159, %v2328, -inf
    %2351 = vmax.xlane.f32.xlu0 %v2350
    %v2352 = vpop.xlane.xlu0 %2351
    %v2353 = vsel %vm299, %v2299, %v2331
    %v2354 = vsel %vm299, %v2302, %v2334
    %v2355 = vsel %vm299, %v2305, %v2337
    %v2356 = vsel %vm299, %v2308, %v2340
    %v2357 = vsel %vm299, %v2311, %v2343
    %v2358 = vsel %vm299, %v2314, %v2346
    %v2359 = vsel %vm299, %v2317, %v2349
    %v2360 = vsel %vm299, %v2320, %v2352
    %s2361 = scalar_lea.vmem [#allocation2], 576
    %v2362 = vld [vmem:[%s2361] sm:$0xff]
    %v2363 = vld [vmem:[%s2361 + $0x8] sm:$0xff]
    %v2364 = vld [vmem:[%s2361 + $0x10] sm:$0xff]
    %v2365 = vld [vmem:[%s2361 + $0x18] sm:$0xff]
    %v2366 = vld [vmem:[%s2361 + $0x20] sm:$0xff]
    %v2367 = vld [vmem:[%s2361 + $0x28] sm:$0xff]
    %v2368 = vld [vmem:[%s2361 + $0x30] sm:$0xff]
    %v2369 = vld [vmem:[%s2361 + $0x38] sm:$0xff]
    %v2371 = vsel %vm56, %v2362, 0
    %v2374 = vsel %vm56, %v2363, 0
    %v2377 = vsel %vm56, %v2364, 0
    %v2380 = vsel %vm56, %v2365, 0
    %v2383 = vsel %vm56, %v2366, 0
    %v2386 = vsel %vm56, %v2367, 0
    %v2389 = vsel %vm56, %v2368, 0
    %v2392 = vsel %vm56, %v2369, 0
    %2394 = vmatprep.subr.mxu0 0.0
    %2395 = vmatpush1.msra.mxu0 0.0
    %2396 = vmatprep.subr.mxu0 0.0
    %2397 = vmatpush1.msra.mxu0 0.0
    %2398 = vmatprep.subr.mxu0 0.0
    %2399 = vmatpush1.msra.mxu0 0.0
    %2400 = vmatprep.subr.mxu0 0.0
    %2401 = vmatpush1.msra.mxu0 0.0
    %2402 = vmatprep.subr.mxu0 0.0
    %2403 = vmatpush1.msra.mxu0 0.0
    %2404 = vmatprep.subr.mxu0 0.0
    %2405 = vmatpush1.msra.mxu0 0.0
    %2406 = vmatprep.subr.mxu0 0.0
    %2407 = vmatpush1.msra.mxu0 0.0
    %2408 = vmatprep.subr.mxu0 0.0
    %2409 = vmatpush1.msra.mxu0 0.0
    %2410 = vmatprep.subr.mxu0 0.0
    %2411 = vmatpush1.msra.mxu0 %v2360
    %2412 = vmatprep.subr.mxu0 0.0
    %2413 = vmatpush1.msra.mxu0 %v2359
    %2414 = vmatprep.subr.mxu0 0.0
    %2415 = vmatpush1.msra.mxu0 %v2358
    %2416 = vmatprep.subr.mxu0 0.0
    %2417 = vmatpush1.msra.mxu0 %v2357
    %2418 = vmatprep.subr.mxu0 0.0
    %2419 = vmatpush1.msra.mxu0 %v2356
    %2420 = vmatprep.subr.mxu0 0.0
    %2421 = vmatpush1.msra.mxu0 %v2355
    %2422 = vmatprep.subr.mxu0 0.0
    %2423 = vmatpush1.msra.mxu0 %v2354
    %2424 = vmatprep.subr.mxu0 0.0
    %2425 = vmatpush1.msra.mxu0 %v2353
    %2426 = vmatprep.subr.mxu0 0.0
    %2427 = vmatpush2.msra.mxu0 0.0
    %2428 = vmatprep.subr.mxu0 0.0
    %2429 = vmatpush2.msra.mxu0 0.0
    %2430 = vmatprep.subr.mxu0 0.0
    %2431 = vmatpush2.msra.mxu0 0.0
    %2432 = vmatprep.subr.mxu0 0.0
    %2433 = vmatpush2.msra.mxu0 0.0
    %2434 = vmatprep.subr.mxu0 0.0
    %2435 = vmatpush2.msra.mxu0 0.0
    %2436 = vmatprep.subr.mxu0 0.0
    %2437 = vmatpush2.msra.mxu0 0.0
    %2438 = vmatprep.subr.mxu0 0.0
    %2439 = vmatpush2.msra.mxu0 0.0
    %2440 = vmatprep.subr.mxu0 0.0
    %2441 = vmatpush2.msra.mxu0 0.0
    %2442 = vmatprep.subr.mxu0 0.0
    %2443 = vmatpush2.msra.mxu0 0.0
    %2444 = vmatprep.subr.mxu0 0.0
    %2445 = vmatpush2.msra.mxu0 0.0
    %2446 = vmatprep.subr.mxu0 0.0
    %2447 = vmatpush2.msra.mxu0 0.0
    %2448 = vmatprep.subr.mxu0 0.0
    %2449 = vmatpush2.msra.mxu0 0.0
    %2450 = vmatprep.subr.mxu0 0.0
    %2451 = vmatpush2.msra.mxu0 0.0
    %2452 = vmatprep.subr.mxu0 0.0
    %2453 = vmatpush2.msra.mxu0 0.0
    %2454 = vmatprep.subr.mxu0 0.0
    %2455 = vmatpush2.msra.mxu0 0.0
    %2456 = vmatprep.subr.mxu0 0.0
    %2457 = vmatpush2.msra.mxu0 0.0
    %2458 = vmatprep.mubr.f32.mxu0 0.0
    %2459 = vmatmul.mubr.f32.gmra.mxu0 %v2371
    %v2460 = vpop.f32.mrf.mxu0
    %v2461 = vadd.f32 0.0, %v2460
    %v2462 = vpop.f32.mrf.mxu0
    %2463 = vmatprep.mubr.f32.mxu0 0.0
    %2464 = vmatmul.mubr.f32.gmra.mxu0 %v2374
    %v2465 = vpop.f32.mrf.mxu0
    %v2466 = vadd.f32 0.0, %v2465
    %v2467 = vpop.f32.mrf.mxu0
    %2468 = vmatprep.mubr.f32.mxu0 0.0
    %2469 = vmatmul.mubr.f32.gmra.mxu0 %v2377
    %v2470 = vpop.f32.mrf.mxu0
    %v2471 = vadd.f32 0.0, %v2470
    %v2472 = vpop.f32.mrf.mxu0
    %2473 = vmatprep.mubr.f32.mxu0 0.0
    %2474 = vmatmul.mubr.f32.gmra.mxu0 %v2380
    %v2475 = vpop.f32.mrf.mxu0
    %v2476 = vadd.f32 0.0, %v2475
    %v2477 = vpop.f32.mrf.mxu0
    %2478 = vmatprep.mubr.f32.mxu0 0.0
    %2479 = vmatmul.mubr.f32.gmra.mxu0 %v2383
    %v2480 = vpop.f32.mrf.mxu0
    %v2481 = vadd.f32 0.0, %v2480
    %v2482 = vpop.f32.mrf.mxu0
    %2483 = vmatprep.mubr.f32.mxu0 0.0
    %2484 = vmatmul.mubr.f32.gmra.mxu0 %v2386
    %v2485 = vpop.f32.mrf.mxu0
    %v2486 = vadd.f32 0.0, %v2485
    %v2487 = vpop.f32.mrf.mxu0
    %2488 = vmatprep.mubr.f32.mxu0 0.0
    %2489 = vmatmul.mubr.f32.gmra.mxu0 %v2389
    %v2490 = vpop.f32.mrf.mxu0
    %v2491 = vadd.f32 0.0, %v2490
    %v2492 = vpop.f32.mrf.mxu0
    %2493 = vmatprep.mubr.f32.mxu0 0.0
    %2494 = vmatmul.mubr.f32.gmra.mxu0 %v2392
    %v2495 = vpop.f32.mrf.mxu0
    %v2496 = vadd.f32 0.0, %v2495
    %v2497 = vpop.f32.mrf.mxu0
    %2498 = vdwg.mxu0
    %v2499 = vadd.f32 %v2269, %v2461
    %v2500 = vadd.f32 %v2270, %v2466
    %v2501 = vadd.f32 %v2271, %v2471
    %v2502 = vadd.f32 %v2272, %v2476
    %v2503 = vadd.f32 %v2273, %v2481
    %v2504 = vadd.f32 %v2274, %v2486
    %v2505 = vadd.f32 %v2275, %v2491
    %v2506 = vadd.f32 %v2276, %v2496
    %v2507 = vld [vmem:[%s4] sm:$0xff]
    %v2509 = vsel %vm56, %v2507, 0
    %2511 = vmatprep.subr.mxu0 0.0
    %2512 = vmatpush1.msra.mxu0 0.0
    %2513 = vmatprep.subr.mxu0 0.0
    %2514 = vmatpush1.msra.mxu0 0.0
    %2515 = vmatprep.subr.mxu0 0.0
    %2516 = vmatpush1.msra.mxu0 0.0
    %2517 = vmatprep.subr.mxu0 0.0
    %2518 = vmatpush1.msra.mxu0 0.0
    %2519 = vmatprep.subr.mxu0 0.0
    %2520 = vmatpush1.msra.mxu0 0.0
    %2521 = vmatprep.subr.mxu0 0.0
    %2522 = vmatpush1.msra.mxu0 0.0
    %2523 = vmatprep.subr.mxu0 0.0
    %2524 = vmatpush1.msra.mxu0 0.0
    %2525 = vmatprep.subr.mxu0 0.0
    %2526 = vmatpush1.msra.mxu0 0.0
    %2527 = vmatprep.subr.mxu0 0.0
    %2528 = vmatpush1.msra.mxu0 %v2506
    %2529 = vmatprep.subr.mxu0 0.0
    %2530 = vmatpush1.msra.mxu0 %v2505
    %2531 = vmatprep.subr.mxu0 0.0
    %2532 = vmatpush1.msra.mxu0 %v2504
    %2533 = vmatprep.subr.mxu0 0.0
    %2534 = vmatpush1.msra.mxu0 %v2503
    %2535 = vmatprep.subr.mxu0 0.0
    %2536 = vmatpush1.msra.mxu0 %v2502
    %2537 = vmatprep.subr.mxu0 0.0
    %2538 = vmatpush1.msra.mxu0 %v2501
    %2539 = vmatprep.subr.mxu0 0.0
    %2540 = vmatpush1.msra.mxu0 %v2500
    %2541 = vmatprep.subr.mxu0 0.0
    %2542 = vmatpush1.msra.mxu0 %v2499
    %2543 = vmatprep.subr.mxu0 0.0
    %2544 = vmatpush2.msra.mxu0 0.0
    %2545 = vmatprep.subr.mxu0 0.0
    %2546 = vmatpush2.msra.mxu0 0.0
    %2547 = vmatprep.subr.mxu0 0.0
    %2548 = vmatpush2.msra.mxu0 0.0
    %2549 = vmatprep.subr.mxu0 0.0
    %2550 = vmatpush2.msra.mxu0 0.0
    %2551 = vmatprep.subr.mxu0 0.0
    %2552 = vmatpush2.msra.mxu0 0.0
    %2553 = vmatprep.subr.mxu0 0.0
    %2554 = vmatpush2.msra.mxu0 0.0
    %2555 = vmatprep.subr.mxu0 0.0
    %2556 = vmatpush2.msra.mxu0 0.0
    %2557 = vmatprep.subr.mxu0 0.0
    %2558 = vmatpush2.msra.mxu0 0.0
    %2559 = vmatprep.subr.mxu0 0.0
    %2560 = vmatpush2.msra.mxu0 0.0
    %2561 = vmatprep.subr.mxu0 0.0
    %2562 = vmatpush2.msra.mxu0 0.0
    %2563 = vmatprep.subr.mxu0 0.0
    %2564 = vmatpush2.msra.mxu0 0.0
    %2565 = vmatprep.subr.mxu0 0.0
    %2566 = vmatpush2.msra.mxu0 0.0
    %2567 = vmatprep.subr.mxu0 0.0
    %2568 = vmatpush2.msra.mxu0 0.0
    %2569 = vmatprep.subr.mxu0 0.0
    %2570 = vmatpush2.msra.mxu0 0.0
    %2571 = vmatprep.subr.mxu0 0.0
    %2572 = vmatpush2.msra.mxu0 0.0
    %2573 = vmatprep.subr.mxu0 0.0
    %2574 = vmatpush2.msra.mxu0 0.0
    %2575 = vmatprep.mubr.f32.mxu0 0.0
    %2576 = vmatmul.mubr.f32.gmra.mxu0 %v2509
    %v2577 = vpop.f32.mrf.mxu0
    %v2578 = vadd.f32 0.0, %v2577
    %v2579 = vpop.f32.mrf.mxu0
    %2580 = vdwg.mxu0
    %vm2581 = vcmask 15360
    %2582 = vst.msk [vmem:[%s5] sm:$0xff] %vm2581, %v2578
    // Predicated region
    $region26: #{gcn_resnet_forward.1} parent=1 // pred_check
      _
    $region27: #{gcn_resnet_forward.1} parent=1 // pred_check_branch
      %2584 = sbr.rel (0) target = $region29
    $region28: #{gcn_resnet_forward.1} parent=1 // pred_region
      _
    $region29: #{gcn_resnet_forward.1} parent=1 // pred_fallthru
      _
    // Predicated region
    $region30: #{gcn_resnet_forward.1} parent=1 // pred_check
      _
    $region31: #{gcn_resnet_forward.1} parent=1 // pred_check_branch
      %2586 = sbr.rel (0) target = $region33
    $region32: #{gcn_resnet_forward.1} parent=1 // pred_region
      _
    $region33: #{gcn_resnet_forward.1} parent=1 // pred_fallthru
      _
    %2587 = vsyncpa [#allocation3], 1

</llo_original>
